<compile_context>
chip_gen: v6e
topology: v6e:2x2x1
jax: 0.10.0
libtpu: 0.0.40
codegen_flags: <defaults>
</compile_context>

<pallas_src>
import functools
import math

import jax
import jax.numpy as jnp
from jax import lax
from jax.experimental import pallas as pl
from jax.experimental.pallas import tpu as pltpu


MASK_VALUE = -1e30  # finite large-negative; avoids exp(-inf - -inf) = NaN pitfalls


def _pick_tile(t):
    """Q/KV tile size: whole sequence if small, else <=256 rows.

    256 keeps the per-block footprint small enough for v7x's 64 MiB VMEM while
    amortizing the ~0.35us/grid-step overhead on v5e/v6e.
    """
    if t <= 256:
        return t
    for cand in (256, 128, 64, 32, 16, 8):
        if t % cand == 0:
            return cand
    return t  # fallback: full sequence (block == full dim is always legal)


# ----------------------- kernel 1: fused QKV projection ---------------------------
def _qkv_kernel(x_ref, w_ref, q_ref, k_ref, v_ref, *, scale):
    # x_ref: (1, TQ, D) f32;  w_ref: (D, 3*H*HS) bf16
    x = x_ref[0].astype(jnp.bfloat16)
    qkv = jnp.dot(x, w_ref[...], preferred_element_type=jnp.float32)  # (TQ, 3*H*HS)
    hh = q_ref.shape[-1]
    # scale q here: O(T*H*HS) elementwise instead of O(T*T) on the scores
    q_ref[0] = (qkv[:, :hh] * scale).astype(q_ref.dtype)
    k_ref[0] = qkv[:, hh:2 * hh].astype(k_ref.dtype)
    v_ref[0] = qkv[:, 2 * hh:].astype(v_ref.dtype)


def _qkv_projection(x, w_qkv, head_size, tq):
    B, T, D = x.shape
    HH = w_qkv.shape[-1] // 3
    kern = functools.partial(_qkv_kernel, scale=1.0 / math.sqrt(head_size))
    out_sd = jax.ShapeDtypeStruct((B, T, HH), jnp.bfloat16)
    return pl.pallas_call(
        kern,
        out_shape=(out_sd, out_sd, out_sd),
        grid_spec=pltpu.PrefetchScalarGridSpec(
            num_scalar_prefetch=0,
            grid=(B, T // tq),
            in_specs=[
                pl.BlockSpec((1, tq, D), lambda b, i: (b, i, 0)),
                pl.BlockSpec((D, 3 * HH), lambda b, i: (0, 0)),
            ],
            out_specs=(
                pl.BlockSpec((1, tq, HH), lambda b, i: (b, i, 0)),
                pl.BlockSpec((1, tq, HH), lambda b, i: (b, i, 0)),
                pl.BlockSpec((1, tq, HH), lambda b, i: (b, i, 0)),
            ),
        ),
        compiler_params=pltpu.CompilerParams(
            dimension_semantics=("parallel", "parallel"),
            vmem_limit_bytes=32 * 1024 * 1024,
        ),
    )(x, w_qkv)


# ------------- kernel 2: flash attention (all heads) + fused out-projection -------
def _flash_kernel(q_ref, k_ref, v_ref, wp_ref, bp_ref, o_ref,
                  m_sc, l_sc, acc_sc, *, num_heads, head_size, tq, tk):
    qi = pl.program_id(1)
    ki = pl.program_id(2)

    @pl.when(ki == 0)
    def _():
        m_sc[...] = jnp.full_like(m_sc, MASK_VALUE)
        l_sc[...] = jnp.zeros_like(l_sc)
        acc_sc[...] = jnp.zeros_like(acc_sc)

    # Causal block skip: only process KV blocks that overlap col <= row.
    @pl.when(ki * tk <= qi * tq + (tq - 1))
    def _():
        q = q_ref[0]  # (tq, H*HS) bf16, already scaled by 1/sqrt(HS)
        k = k_ref[0]  # (tk, H*HS) bf16
        v = v_ref[0]  # (tk, H*HS) bf16

        # Causal mask for this block, hoisted out of the head loop.
        row = qi * tq + lax.broadcasted_iota(jnp.int32, (tq, tk), 0)
        col = ki * tk + lax.broadcasted_iota(jnp.int32, (tq, tk), 1)
        causal = col <= row

        for h in range(num_heads):  # static unroll; lane slices of one VMEM slab
            sl = slice(h * head_size, (h + 1) * head_size)
            s = lax.dot_general(q[:, sl], k[:, sl],
                                (((1,), (1,)), ((), ())),
                                preferred_element_type=jnp.float32)   # (tq, tk)
            s = jnp.where(causal, s, MASK_VALUE)
            m_prev = m_sc[h]                                          # (tq, 1)
            m_new = jnp.maximum(m_prev, s.max(axis=-1, keepdims=True))
            alpha = jnp.exp(m_prev - m_new)
            p = jnp.exp(s - m_new)                                    # (tq, tk)
            l_sc[h] = alpha * l_sc[h] + p.sum(axis=-1, keepdims=True)
            acc_sc[h] = alpha * acc_sc[h] + jnp.dot(
                p.astype(jnp.bfloat16), v[:, sl],
                preferred_element_type=jnp.float32)                   # (tq, HS)
            m_sc[h] = m_new

    # Finalize: normalize, concat heads (lane-dense), fused output projection.
    @pl.when(ki == pl.num_programs(2) - 1)
    def _():
        outs = []
        for h in range(num_heads):
            inv_l = pl.reciprocal(l_sc[h], approx=True)   # EUP slot, ~free
            outs.append(acc_sc[h] * inv_l)                # (tq, HS) f32
        cat = jnp.concatenate(outs, axis=-1)              # (tq, H*HS)
        y = jnp.dot(cat.astype(jnp.bfloat16), wp_ref[...],
                    preferred_element_type=jnp.float32) + bp_ref[...]
        o_ref[0] = y.astype(o_ref.dtype)


def _flash_attention_proj(q, k, v, w_proj, b_proj, *, num_heads, head_size,
                          d_model, tq, tk):
    B, T, HH = q.shape
    kern = functools.partial(_flash_kernel, num_heads=num_heads,
                             head_size=head_size, tq=tq, tk=tk)
    return pl.pallas_call(
        kern,
        out_shape=jax.ShapeDtypeStruct((B, T, d_model), jnp.float32),
        grid_spec=pltpu.PrefetchScalarGridSpec(
            num_scalar_prefetch=0,
            grid=(B, T // tq, T // tk),
            in_specs=[
                pl.BlockSpec((1, tq, HH), lambda b, qi, ki: (b, qi, 0)),
                pl.BlockSpec((1, tk, HH), lambda b, qi, ki: (b, ki, 0)),
                pl.BlockSpec((1, tk, HH), lambda b, qi, ki: (b, ki, 0)),
                pl.BlockSpec((HH, d_model), lambda b, qi, ki: (0, 0)),
                pl.BlockSpec((1, d_model), lambda b, qi, ki: (0, 0)),
            ],
            out_specs=pl.BlockSpec((1, tq, d_model), lambda b, qi, ki: (b, qi, 0)),
            scratch_shapes=[
                pltpu.VMEM((num_heads, tq, 1), jnp.float32),           # m
                pltpu.VMEM((num_heads, tq, 1), jnp.float32),           # l
                pltpu.VMEM((num_heads, tq, head_size), jnp.float32),   # acc
            ],
        ),
        compiler_params=pltpu.CompilerParams(
            dimension_semantics=("parallel", "parallel", "arbitrary"),
            vmem_limit_bytes=32 * 1024 * 1024,
        ),
    )(q, k, v, w_proj, b_proj)


# --------------------------------- module wrapper ---------------------------------
@jax.jit
def multi_head_attention(x, params):
    """x: (B, T, D) float32 -> (B, T, D) float32 (eval mode, dropout = identity)."""
    B, T, D = x.shape
    H, _, HS = params["wq"].shape
    # Stack per-head weights into a single (D, 3*H*HS) slab (tiny, one-time XLA op)
    # so the QKV projection is ONE lane-dense MXU matmul instead of 3*H skinny ones.
    w_qkv = jnp.concatenate(
        [params["wq"].transpose(1, 0, 2).reshape(D, H * HS),
         params["wk"].transpose(1, 0, 2).reshape(D, H * HS),
         params["wv"].transpose(1, 0, 2).reshape(D, H * HS)],
        axis=-1).astype(jnp.bfloat16)
    w_proj = params["w_proj"].astype(jnp.bfloat16)

    tq = tk = _pick_tile(T)
    q, k, v = _qkv_projection(x, w_qkv, HS, tq)            # (B, T, H*HS) bf16, q pre-scaled
    return _flash_attention_proj(q, k, v, w_proj, params["b_proj"],
                                 num_heads=H, head_size=HS, d_model=D, tq=tq, tk=tk)


def init_params(key, h, head_size, d_model):
    k1, k2, k3, k4, k5 = jax.random.split(key, 5)
    scale_in = 1.0 / jnp.sqrt(d_model)
    scale_proj = 1.0 / jnp.sqrt(h * head_size)
    return {
        "wq": jax.random.normal(k1, (h, d_model, head_size), jnp.float32) * scale_in,
        "wk": jax.random.normal(k2, (h, d_model, head_size), jnp.float32) * scale_in,
        "wv": jax.random.normal(k3, (h, d_model, head_size), jnp.float32) * scale_in,
        "w_proj": jax.random.normal(k4, (h * head_size, d_model), jnp.float32) * scale_proj,
        "b_proj": jax.random.normal(k5, (1, d_model), jnp.float32) * 0.01,
    }


# ------------------------------- pure-JAX reference -------------------------------
def _reference(x, params):
    B, T, D = x.shape
    H, _, HS = params["wq"].shape
    outs = []
    for hd in range(H):
        q = x @ params["wq"][hd]
        k = x @ params["wk"][hd]
        v = x @ params["wv"][hd]
        wei = q @ jnp.swapaxes(k, -2, -1) / (HS ** 0.5)
        mask = jnp.tril(jnp.ones((T, T), dtype=bool))
        wei = jnp.where(mask, wei, -jnp.inf)
        wei = jax.nn.softmax(wei, axis=-1)
        outs.append(wei @ v)
    cat = jnp.concatenate(outs, axis=-1)
    return cat @ params["w_proj"] + params["b_proj"][0]


if __name__ == "__main__":
    # small shapes consistent with the module
    B, T = 2, 8            # batch, sequence length (block_size == T here)
    d_model = 32
    h, head_size = 4, 8

    key = jax.random.PRNGKey(0)
    kx, kp = jax.random.split(key)
    x = jax.random.normal(kx, (B, T, d_model), jnp.float32)
    params = init_params(kp, h, head_size, d_model)

    out = jax.block_until_ready(multi_head_attention(x, params))
    ref = _reference(x, params)

    assert out.shape == (B, T, d_model)
    # bf16 MXU operands (f32 accumulation) -> compare at ~1e-2 tolerance
    assert jnp.allclose(out, ref, atol=3e-2, rtol=3e-2), float(jnp.max(jnp.abs(out - ref)))

    print("KERNEL_OK")
</pallas_src>

<mosaic_0001>
module attributes {stable_mosaic.version = 11 : i64} {
  func.func @_qkv_kernel(%arg0: i32, %arg1: i32, %arg2: memref<1x8x32xf32, #tpu.memory_space<vmem>>, %arg3: memref<32x96xbf16, #tpu.memory_space<vmem>>, %arg4: memref<1x8x32xbf16, #tpu.memory_space<vmem>>, %arg5: memref<1x8x32xbf16, #tpu.memory_space<vmem>>, %arg6: memref<1x8x32xbf16, #tpu.memory_space<vmem>>) attributes {dimension_semantics = [#tpu.dimension_semantics<parallel>, #tpu.dimension_semantics<parallel>], iteration_bounds = array<i64: 2, 1>, scalar_prefetch = 0 : i64, scratch_operands = 0 : i64, tpu.core_type = #tpu.core_type<tc>, window_params = [{transform_indices = @transform_0, window_bounds = array<i64: 1, 8, 32>}, {pipeline_mode = #tpu.pipeline_mode<synchronous>, transform_indices = @transform_1, window_bounds = array<i64: 32, 96>}, {transform_indices = @transform_2, window_bounds = array<i64: 1, 8, 32>}, {transform_indices = @transform_3, window_bounds = array<i64: 1, 8, 32>}, {transform_indices = @transform_4, window_bounds = array<i64: 1, 8, 32>}]} {
    %c0 = arith.constant 0 : index
    %c0_0 = arith.constant 0 : index
    %c0_1 = arith.constant 0 : index
    %0 = vector.load %arg2[%c0, %c0_0, %c0_1] : memref<1x8x32xf32, #tpu.memory_space<vmem>>, vector<1x8x32xf32>
    %1 = vector.shape_cast %0 : vector<1x8x32xf32> to vector<8x32xf32>
    %2 = arith.truncf %1 : vector<8x32xf32> to vector<8x32xbf16>
    %c0_2 = arith.constant 0 : index
    %c0_3 = arith.constant 0 : index
    %3 = vector.load %arg3[%c0_2, %c0_3] : memref<32x96xbf16, #tpu.memory_space<vmem>>, vector<32x96xbf16>
    %cst = arith.constant dense<0.000000e+00> : vector<8x96xf32>
    %4 = tpu.matmul %2, %3, %cst {dimension_numbers = #tpu.dot_dimension_numbers<[1], [0], [0], [1], [0, 0, 1, 1], [], []>} : vector<8x32xbf16>, vector<32x96xbf16>, vector<8x96xf32> -> vector<8x96xf32>
    %5 = vector.extract_strided_slice %4 {offsets = [0, 0], sizes = [8, 32], strides = [1, 1]} : vector<8x96xf32> to vector<8x32xf32>
    %cst_4 = arith.constant 0.353553385 : f32
    %6 = vector.broadcast %cst_4 : f32 to vector<8x32xf32>
    %7 = arith.mulf %5, %6 : vector<8x32xf32>
    %8 = arith.truncf %7 : vector<8x32xf32> to vector<8x32xbf16>
    %c0_5 = arith.constant 0 : index
    %c0_6 = arith.constant 0 : index
    %c0_7 = arith.constant 0 : index
    %9 = vector.load %arg4[%c0_5, %c0_6, %c0_7] : memref<1x8x32xbf16, #tpu.memory_space<vmem>>, vector<1x8x32xbf16>
    %10 = vector.shape_cast %9 : vector<1x8x32xbf16> to vector<8x32xbf16>
    %11 = vector.shape_cast %8 : vector<8x32xbf16> to vector<1x8x32xbf16>
    tpu.vector_store %arg4[%c0_5, %c0_6, %c0_7], %11 {strides = array<i32>} : memref<1x8x32xbf16, #tpu.memory_space<vmem>>, vector<1x8x32xbf16>,
    %12 = vector.extract_strided_slice %4 {offsets = [0, 32], sizes = [8, 32], strides = [1, 1]} : vector<8x96xf32> to vector<8x32xf32>
    %13 = arith.truncf %12 : vector<8x32xf32> to vector<8x32xbf16>
    %c0_8 = arith.constant 0 : index
    %c0_9 = arith.constant 0 : index
    %c0_10 = arith.constant 0 : index
    %14 = vector.load %arg5[%c0_8, %c0_9, %c0_10] : memref<1x8x32xbf16, #tpu.memory_space<vmem>>, vector<1x8x32xbf16>
    %15 = vector.shape_cast %14 : vector<1x8x32xbf16> to vector<8x32xbf16>
    %16 = vector.shape_cast %13 : vector<8x32xbf16> to vector<1x8x32xbf16>
    tpu.vector_store %arg5[%c0_8, %c0_9, %c0_10], %16 {strides = array<i32>} : memref<1x8x32xbf16, #tpu.memory_space<vmem>>, vector<1x8x32xbf16>,
    %17 = vector.extract_strided_slice %4 {offsets = [0, 64], sizes = [8, 32], strides = [1, 1]} : vector<8x96xf32> to vector<8x32xf32>
    %18 = arith.truncf %17 : vector<8x32xf32> to vector<8x32xbf16>
    %c0_11 = arith.constant 0 : index
    %c0_12 = arith.constant 0 : index
    %c0_13 = arith.constant 0 : index
    %19 = vector.load %arg6[%c0_11, %c0_12, %c0_13] : memref<1x8x32xbf16, #tpu.memory_space<vmem>>, vector<1x8x32xbf16>
    %20 = vector.shape_cast %19 : vector<1x8x32xbf16> to vector<8x32xbf16>
    %21 = vector.shape_cast %18 : vector<8x32xbf16> to vector<1x8x32xbf16>
    tpu.vector_store %arg6[%c0_11, %c0_12, %c0_13], %21 {strides = array<i32>} : memref<1x8x32xbf16, #tpu.memory_space<vmem>>, vector<1x8x32xbf16>,
    return
  }
  func.func @transform_0(%arg0: i32, %arg1: i32) -> (i32, i32, i32) {
    %c0_i32 = arith.constant 0 : i32
    %c0_i32_0 = arith.constant 0 : i32
    return %arg0, %arg1, %c0_i32 : i32, i32, i32
  }
  func.func @transform_1(%arg0: i32, %arg1: i32) -> (i32, i32) {
    %c0_i32 = arith.constant 0 : i32
    %c0_i32_0 = arith.constant 0 : i32
    %c0_i32_1 = arith.constant 0 : i32
    return %c0_i32, %c0_i32_0 : i32, i32
  }
  func.func @transform_2(%arg0: i32, %arg1: i32) -> (i32, i32, i32) {
    %c0_i32 = arith.constant 0 : i32
    %c0_i32_0 = arith.constant 0 : i32
    return %arg0, %arg1, %c0_i32 : i32, i32, i32
  }
  func.func @transform_3(%arg0: i32, %arg1: i32) -> (i32, i32, i32) {
    %c0_i32 = arith.constant 0 : i32
    %c0_i32_0 = arith.constant 0 : i32
    return %arg0, %arg1, %c0_i32 : i32, i32, i32
  }
  func.func @transform_4(%arg0: i32, %arg1: i32) -> (i32, i32, i32) {
    %c0_i32 = arith.constant 0 : i32
    %c0_i32_0 = arith.constant 0 : i32
    return %arg0, %arg1, %c0_i32 : i32, i32, i32
  }
}

module attributes {stable_mosaic.version = 11 : i64} {
  func.func @_flash_kernel(%arg0: i32, %arg1: i32, %arg2: i32, %arg3: memref<1x8x32xbf16, #tpu.memory_space<vmem>>, %arg4: memref<1x8x32xbf16, #tpu.memory_space<vmem>>, %arg5: memref<1x8x32xbf16, #tpu.memory_space<vmem>>, %arg6: memref<32x32xbf16, #tpu.memory_space<vmem>>, %arg7: memref<1x32xf32, #tpu.memory_space<vmem>>, %arg8: memref<1x8x32xf32, #tpu.memory_space<vmem>>, %arg9: memref<4x8x1xf32, #tpu.memory_space<vmem>>, %arg10: memref<4x8x1xf32, #tpu.memory_space<vmem>>, %arg11: memref<4x8x8xf32, #tpu.memory_space<vmem>>) attributes {dimension_semantics = [#tpu.dimension_semantics<parallel>, #tpu.dimension_semantics<parallel>, #tpu.dimension_semantics<arbitrary>], iteration_bounds = array<i64: 2, 1, 1>, scalar_prefetch = 0 : i64, scratch_operands = 3 : i64, tpu.core_type = #tpu.core_type<tc>, window_params = [{transform_indices = @transform_0, window_bounds = array<i64: 1, 8, 32>}, {transform_indices = @transform_1, window_bounds = array<i64: 1, 8, 32>}, {transform_indices = @transform_2, window_bounds = array<i64: 1, 8, 32>}, {pipeline_mode = #tpu.pipeline_mode<synchronous>, transform_indices = @transform_3, window_bounds = array<i64: 32, 32>}, {pipeline_mode = #tpu.pipeline_mode<synchronous>, transform_indices = @transform_4, window_bounds = array<i64: 1, 32>}, {transform_indices = @transform_5, window_bounds = array<i64: 1, 8, 32>}]} {
    %c0_i32 = arith.constant 0 : i32
    %0 = arith.cmpi eq, %arg2, %c0_i32 : i32
    %1 = arith.extui %0 : i1 to i32
    %c0_i32_0 = arith.constant 0 : i32
    %2 = arith.cmpi ne, %1, %c0_i32_0 : i32
    scf.if %2 {
      %cst = arith.constant -1.000000e+30 : f32
      %12 = vector.broadcast %cst : f32 to vector<4x8x1xf32>
      %c0 = arith.constant 0 : index
      %c0_5 = arith.constant 0 : index
      %c0_6 = arith.constant 0 : index
      %13 = vector.load %arg9[%c0, %c0_5, %c0_6] : memref<4x8x1xf32, #tpu.memory_space<vmem>>, vector<4x8x1xf32>
      tpu.vector_store %arg9[%c0, %c0_5, %c0_6], %12 {strides = array<i32>} : memref<4x8x1xf32, #tpu.memory_space<vmem>>, vector<4x8x1xf32>,
      %cst_7 = arith.constant 0.000000e+00 : f32
      %14 = vector.broadcast %cst_7 : f32 to vector<4x8x1xf32>
      %c0_8 = arith.constant 0 : index
      %c0_9 = arith.constant 0 : index
      %c0_10 = arith.constant 0 : index
      %15 = vector.load %arg10[%c0_8, %c0_9, %c0_10] : memref<4x8x1xf32, #tpu.memory_space<vmem>>, vector<4x8x1xf32>
      tpu.vector_store %arg10[%c0_8, %c0_9, %c0_10], %14 {strides = array<i32>} : memref<4x8x1xf32, #tpu.memory_space<vmem>>, vector<4x8x1xf32>,
      %cst_11 = arith.constant 0.000000e+00 : f32
      %16 = vector.broadcast %cst_11 : f32 to vector<4x8x8xf32>
      %c0_12 = arith.constant 0 : index
      %c0_13 = arith.constant 0 : index
      %c0_14 = arith.constant 0 : index
      %17 = vector.load %arg11[%c0_12, %c0_13, %c0_14] : memref<4x8x8xf32, #tpu.memory_space<vmem>>, vector<4x8x8xf32>
      tpu.vector_store %arg11[%c0_12, %c0_13, %c0_14], %16 {strides = array<i32>} : memref<4x8x8xf32, #tpu.memory_space<vmem>>, vector<4x8x8xf32>,
    } else {
    }
    %c8_i32 = arith.constant 8 : i32
    %3 = arith.muli %arg2, %c8_i32 : i32
    %c8_i32_1 = arith.constant 8 : i32
    %4 = arith.muli %arg1, %c8_i32_1 : i32
    %c7_i32 = arith.constant 7 : i32
    %5 = arith.addi %4, %c7_i32 : i32
    %6 = arith.cmpi sle, %3, %5 : i32
    %7 = arith.extui %6 : i1 to i32
    %c0_i32_2 = arith.constant 0 : i32
    %8 = arith.cmpi ne, %7, %c0_i32_2 : i32
    scf.if %8 {
      %c0 = arith.constant 0 : index
      %c0_5 = arith.constant 0 : index
      %c0_6 = arith.constant 0 : index
      %12 = vector.load %arg3[%c0, %c0_5, %c0_6] : memref<1x8x32xbf16, #tpu.memory_space<vmem>>, vector<1x8x32xbf16>
      %13 = vector.shape_cast %12 : vector<1x8x32xbf16> to vector<8x32xbf16>
      %c0_7 = arith.constant 0 : index
      %c0_8 = arith.constant 0 : index
      %c0_9 = arith.constant 0 : index
      %14 = vector.load %arg4[%c0_7, %c0_8, %c0_9] : memref<1x8x32xbf16, #tpu.memory_space<vmem>>, vector<1x8x32xbf16>
      %15 = vector.shape_cast %14 : vector<1x8x32xbf16> to vector<8x32xbf16>
      %c0_10 = arith.constant 0 : index
      %c0_11 = arith.constant 0 : index
      %c0_12 = arith.constant 0 : index
      %16 = vector.load %arg5[%c0_10, %c0_11, %c0_12] : memref<1x8x32xbf16, #tpu.memory_space<vmem>>, vector<1x8x32xbf16>
      %17 = vector.shape_cast %16 : vector<1x8x32xbf16> to vector<8x32xbf16>
      %c8_i32_13 = arith.constant 8 : i32
      %18 = arith.muli %arg1, %c8_i32_13 : i32
      %19 = tpu.iota {dimensions = array<i32: 0>} : vector<8x8xi32>
      %20 = vector.broadcast %18 : i32 to vector<8x8xi32>
      %21 = arith.addi %20, %19 : vector<8x8xi32>
      %c8_i32_14 = arith.constant 8 : i32
      %22 = arith.muli %arg2, %c8_i32_14 : i32
      %23 = tpu.iota {dimensions = array<i32: 1>} : vector<8x8xi32>
      %24 = vector.broadcast %22 : i32 to vector<8x8xi32>
      %25 = arith.addi %24, %23 : vector<8x8xi32>
      %26 = arith.cmpi sle, %25, %21 : vector<8x8xi32>
      %27 = vector.extract_strided_slice %13 {offsets = [0, 0], sizes = [8, 8], strides = [1, 1]} : vector<8x32xbf16> to vector<8x8xbf16>
      %28 = vector.extract_strided_slice %15 {offsets = [0, 0], sizes = [8, 8], strides = [1, 1]} : vector<8x32xbf16> to vector<8x8xbf16>
      %cst = arith.constant dense<0.000000e+00> : vector<8x8xf32>
      %29 = tpu.matmul %27, %28, %cst {dimension_numbers = #tpu.dot_dimension_numbers<[1], [1], [0], [0], [0, 0, 1, 0], [], []>} : vector<8x8xbf16>, vector<8x8xbf16>, vector<8x8xf32> -> vector<8x8xf32>
      %cst_15 = arith.constant -1.000000e+30 : f32
      %30 = vector.broadcast %cst_15 : f32 to vector<8x8xf32>
      %31 = arith.select %26, %29, %30 : vector<8x8xi1>, vector<8x8xf32>
      %c0_16 = arith.constant 0 : index
      %c0_17 = arith.constant 0 : index
      %c0_18 = arith.constant 0 : index
      %32 = vector.load %arg9[%c0_16, %c0_17, %c0_18] : memref<4x8x1xf32, #tpu.memory_space<vmem>>, vector<1x8x1xf32>
      %33 = vector.shape_cast %32 : vector<1x8x1xf32> to vector<8x1xf32>
      %cst_19 = arith.constant dense<0xFF800000> : vector<8xf32>
      %34 = vector.multi_reduction <maximumf>, %31, %cst_19 [1] : vector<8x8xf32> to vector<8xf32>
      %35 = vector.shape_cast %34 : vector<8xf32> to vector<8x1xf32>
      %36 = arith.maximumf %33, %35 : vector<8x1xf32>
      %37 = arith.subf %33, %36 : vector<8x1xf32>
      %38 = math.exp %37 : vector<8x1xf32>
      %39 = vector.broadcast %36 : vector<8x1xf32> to vector<8x8xf32>
      %40 = arith.subf %31, %39 : vector<8x8xf32>
      %41 = math.exp %40 : vector<8x8xf32>
      %c0_20 = arith.constant 0 : index
      %c0_21 = arith.constant 0 : index
      %c0_22 = arith.constant 0 : index
      %42 = vector.load %arg10[%c0_20, %c0_21, %c0_22] : memref<4x8x1xf32, #tpu.memory_space<vmem>>, vector<1x8x1xf32>
      %43 = vector.shape_cast %42 : vector<1x8x1xf32> to vector<8x1xf32>
      %44 = arith.mulf %38, %43 : vector<8x1xf32>
      %cst_23 = arith.constant dense<0.000000e+00> : vector<8xf32>
      %45 = vector.multi_reduction <add>, %41, %cst_23 [1] : vector<8x8xf32> to vector<8xf32>
      %46 = vector.shape_cast %45 : vector<8xf32> to vector<8x1xf32>
      %47 = arith.addf %44, %46 : vector<8x1xf32>
      %c0_24 = arith.constant 0 : index
      %c0_25 = arith.constant 0 : index
      %c0_26 = arith.constant 0 : index
      %48 = vector.load %arg10[%c0_24, %c0_25, %c0_26] : memref<4x8x1xf32, #tpu.memory_space<vmem>>, vector<1x8x1xf32>
      %49 = vector.shape_cast %48 : vector<1x8x1xf32> to vector<8x1xf32>
      %50 = vector.shape_cast %47 : vector<8x1xf32> to vector<1x8x1xf32>
      tpu.vector_store %arg10[%c0_24, %c0_25, %c0_26], %50 {strides = array<i32>} : memref<4x8x1xf32, #tpu.memory_space<vmem>>, vector<1x8x1xf32>,
      %c0_27 = arith.constant 0 : index
      %c0_28 = arith.constant 0 : index
      %c0_29 = arith.constant 0 : index
      %51 = vector.load %arg11[%c0_27, %c0_28, %c0_29] : memref<4x8x8xf32, #tpu.memory_space<vmem>>, vector<1x8x8xf32>
      %52 = vector.shape_cast %51 : vector<1x8x8xf32> to vector<8x8xf32>
      %53 = vector.broadcast %38 : vector<8x1xf32> to vector<8x8xf32>
      %54 = arith.mulf %53, %52 : vector<8x8xf32>
      %55 = arith.truncf %41 : vector<8x8xf32> to vector<8x8xbf16>
      %56 = vector.extract_strided_slice %17 {offsets = [0, 0], sizes = [8, 8], strides = [1, 1]} : vector<8x32xbf16> to vector<8x8xbf16>
      %cst_30 = arith.constant dense<0.000000e+00> : vector<8x8xf32>
      %57 = tpu.matmul %55, %56, %cst_30 {dimension_numbers = #tpu.dot_dimension_numbers<[1], [0], [0], [1], [0, 0, 1, 1], [], []>} : vector<8x8xbf16>, vector<8x8xbf16>, vector<8x8xf32> -> vector<8x8xf32>
      %58 = arith.addf %54, %57 : vector<8x8xf32>
      %c0_31 = arith.constant 0 : index
      %c0_32 = arith.constant 0 : index
      %c0_33 = arith.constant 0 : index
      %59 = vector.load %arg11[%c0_31, %c0_32, %c0_33] : memref<4x8x8xf32, #tpu.memory_space<vmem>>, vector<1x8x8xf32>
      %60 = vector.shape_cast %59 : vector<1x8x8xf32> to vector<8x8xf32>
      %61 = vector.shape_cast %58 : vector<8x8xf32> to vector<1x8x8xf32>
      tpu.vector_store %arg11[%c0_31, %c0_32, %c0_33], %61 {strides = array<i32>} : memref<4x8x8xf32, #tpu.memory_space<vmem>>, vector<1x8x8xf32>,
      %c0_34 = arith.constant 0 : index
      %c0_35 = arith.constant 0 : index
      %c0_36 = arith.constant 0 : index
      %62 = vector.load %arg9[%c0_34, %c0_35, %c0_36] : memref<4x8x1xf32, #tpu.memory_space<vmem>>, vector<1x8x1xf32>
      %63 = vector.shape_cast %62 : vector<1x8x1xf32> to vector<8x1xf32>
      %64 = vector.shape_cast %36 : vector<8x1xf32> to vector<1x8x1xf32>
      tpu.vector_store %arg9[%c0_34, %c0_35, %c0_36], %64 {strides = array<i32>} : memref<4x8x1xf32, #tpu.memory_space<vmem>>, vector<1x8x1xf32>,
      %65 = vector.extract_strided_slice %13 {offsets = [0, 8], sizes = [8, 8], strides = [1, 1]} : vector<8x32xbf16> to vector<8x8xbf16>
      %66 = vector.extract_strided_slice %15 {offsets = [0, 8], sizes = [8, 8], strides = [1, 1]} : vector<8x32xbf16> to vector<8x8xbf16>
      %cst_37 = arith.constant dense<0.000000e+00> : vector<8x8xf32>
      %67 = tpu.matmul %65, %66, %cst_37 {dimension_numbers = #tpu.dot_dimension_numbers<[1], [1], [0], [0], [0, 0, 1, 0], [], []>} : vector<8x8xbf16>, vector<8x8xbf16>, vector<8x8xf32> -> vector<8x8xf32>
      %cst_38 = arith.constant -1.000000e+30 : f32
      %68 = vector.broadcast %cst_38 : f32 to vector<8x8xf32>
      %69 = arith.select %26, %67, %68 : vector<8x8xi1>, vector<8x8xf32>
      %c1 = arith.constant 1 : index
      %c0_39 = arith.constant 0 : index
      %c0_40 = arith.constant 0 : index
      %70 = vector.load %arg9[%c1, %c0_39, %c0_40] : memref<4x8x1xf32, #tpu.memory_space<vmem>>, vector<1x8x1xf32>
      %71 = vector.shape_cast %70 : vector<1x8x1xf32> to vector<8x1xf32>
      %cst_41 = arith.constant dense<0xFF800000> : vector<8xf32>
      %72 = vector.multi_reduction <maximumf>, %69, %cst_41 [1] : vector<8x8xf32> to vector<8xf32>
      %73 = vector.shape_cast %72 : vector<8xf32> to vector<8x1xf32>
      %74 = arith.maximumf %71, %73 : vector<8x1xf32>
      %75 = arith.subf %71, %74 : vector<8x1xf32>
      %76 = math.exp %75 : vector<8x1xf32>
      %77 = vector.broadcast %74 : vector<8x1xf32> to vector<8x8xf32>
      %78 = arith.subf %69, %77 : vector<8x8xf32>
      %79 = math.exp %78 : vector<8x8xf32>
      %c1_42 = arith.constant 1 : index
      %c0_43 = arith.constant 0 : index
      %c0_44 = arith.constant 0 : index
      %80 = vector.load %arg10[%c1_42, %c0_43, %c0_44] : memref<4x8x1xf32, #tpu.memory_space<vmem>>, vector<1x8x1xf32>
      %81 = vector.shape_cast %80 : vector<1x8x1xf32> to vector<8x1xf32>
      %82 = arith.mulf %76, %81 : vector<8x1xf32>
      %cst_45 = arith.constant dense<0.000000e+00> : vector<8xf32>
      %83 = vector.multi_reduction <add>, %79, %cst_45 [1] : vector<8x8xf32> to vector<8xf32>
      %84 = vector.shape_cast %83 : vector<8xf32> to vector<8x1xf32>
      %85 = arith.addf %82, %84 : vector<8x1xf32>
      %c1_46 = arith.constant 1 : index
      %c0_47 = arith.constant 0 : index
      %c0_48 = arith.constant 0 : index
      %86 = vector.load %arg10[%c1_46, %c0_47, %c0_48] : memref<4x8x1xf32, #tpu.memory_space<vmem>>, vector<1x8x1xf32>
      %87 = vector.shape_cast %86 : vector<1x8x1xf32> to vector<8x1xf32>
      %88 = vector.shape_cast %85 : vector<8x1xf32> to vector<1x8x1xf32>
      tpu.vector_store %arg10[%c1_46, %c0_47, %c0_48], %88 {strides = array<i32>} : memref<4x8x1xf32, #tpu.memory_space<vmem>>, vector<1x8x1xf32>,
      %c1_49 = arith.constant 1 : index
      %c0_50 = arith.constant 0 : index
      %c0_51 = arith.constant 0 : index
      %89 = vector.load %arg11[%c1_49, %c0_50, %c0_51] : memref<4x8x8xf32, #tpu.memory_space<vmem>>, vector<1x8x8xf32>
      %90 = vector.shape_cast %89 : vector<1x8x8xf32> to vector<8x8xf32>
      %91 = vector.broadcast %76 : vector<8x1xf32> to vector<8x8xf32>
      %92 = arith.mulf %91, %90 : vector<8x8xf32>
      %93 = arith.truncf %79 : vector<8x8xf32> to vector<8x8xbf16>
      %94 = vector.extract_strided_slice %17 {offsets = [0, 8], sizes = [8, 8], strides = [1, 1]} : vector<8x32xbf16> to vector<8x8xbf16>
      %cst_52 = arith.constant dense<0.000000e+00> : vector<8x8xf32>
      %95 = tpu.matmul %93, %94, %cst_52 {dimension_numbers = #tpu.dot_dimension_numbers<[1], [0], [0], [1], [0, 0, 1, 1], [], []>} : vector<8x8xbf16>, vector<8x8xbf16>, vector<8x8xf32> -> vector<8x8xf32>
      %96 = arith.addf %92, %95 : vector<8x8xf32>
      %c1_53 = arith.constant 1 : index
      %c0_54 = arith.constant 0 : index
      %c0_55 = arith.constant 0 : index
      %97 = vector.load %arg11[%c1_53, %c0_54, %c0_55] : memref<4x8x8xf32, #tpu.memory_space<vmem>>, vector<1x8x8xf32>
      %98 = vector.shape_cast %97 : vector<1x8x8xf32> to vector<8x8xf32>
      %99 = vector.shape_cast %96 : vector<8x8xf32> to vector<1x8x8xf32>
      tpu.vector_store %arg11[%c1_53, %c0_54, %c0_55], %99 {strides = array<i32>} : memref<4x8x8xf32, #tpu.memory_space<vmem>>, vector<1x8x8xf32>,
      %c1_56 = arith.constant 1 : index
      %c0_57 = arith.constant 0 : index
      %c0_58 = arith.constant 0 : index
      %100 = vector.load %arg9[%c1_56, %c0_57, %c0_58] : memref<4x8x1xf32, #tpu.memory_space<vmem>>, vector<1x8x1xf32>
      %101 = vector.shape_cast %100 : vector<1x8x1xf32> to vector<8x1xf32>
      %102 = vector.shape_cast %74 : vector<8x1xf32> to vector<1x8x1xf32>
      tpu.vector_store %arg9[%c1_56, %c0_57, %c0_58], %102 {strides = array<i32>} : memref<4x8x1xf32, #tpu.memory_space<vmem>>, vector<1x8x1xf32>,
      %103 = vector.extract_strided_slice %13 {offsets = [0, 16], sizes = [8, 8], strides = [1, 1]} : vector<8x32xbf16> to vector<8x8xbf16>
      %104 = vector.extract_strided_slice %15 {offsets = [0, 16], sizes = [8, 8], strides = [1, 1]} : vector<8x32xbf16> to vector<8x8xbf16>
      %cst_59 = arith.constant dense<0.000000e+00> : vector<8x8xf32>
      %105 = tpu.matmul %103, %104, %cst_59 {dimension_numbers = #tpu.dot_dimension_numbers<[1], [1], [0], [0], [0, 0, 1, 0], [], []>} : vector<8x8xbf16>, vector<8x8xbf16>, vector<8x8xf32> -> vector<8x8xf32>
      %cst_60 = arith.constant -1.000000e+30 : f32
      %106 = vector.broadcast %cst_60 : f32 to vector<8x8xf32>
      %107 = arith.select %26, %105, %106 : vector<8x8xi1>, vector<8x8xf32>
      %c2 = arith.constant 2 : index
      %c0_61 = arith.constant 0 : index
      %c0_62 = arith.constant 0 : index
      %108 = vector.load %arg9[%c2, %c0_61, %c0_62] : memref<4x8x1xf32, #tpu.memory_space<vmem>>, vector<1x8x1xf32>
      %109 = vector.shape_cast %108 : vector<1x8x1xf32> to vector<8x1xf32>
      %cst_63 = arith.constant dense<0xFF800000> : vector<8xf32>
      %110 = vector.multi_reduction <maximumf>, %107, %cst_63 [1] : vector<8x8xf32> to vector<8xf32>
      %111 = vector.shape_cast %110 : vector<8xf32> to vector<8x1xf32>
      %112 = arith.maximumf %109, %111 : vector<8x1xf32>
      %113 = arith.subf %109, %112 : vector<8x1xf32>
      %114 = math.exp %113 : vector<8x1xf32>
      %115 = vector.broadcast %112 : vector<8x1xf32> to vector<8x8xf32>
      %116 = arith.subf %107, %115 : vector<8x8xf32>
      %117 = math.exp %116 : vector<8x8xf32>
      %c2_64 = arith.constant 2 : index
      %c0_65 = arith.constant 0 : index
      %c0_66 = arith.constant 0 : index
      %118 = vector.load %arg10[%c2_64, %c0_65, %c0_66] : memref<4x8x1xf32, #tpu.memory_space<vmem>>, vector<1x8x1xf32>
      %119 = vector.shape_cast %118 : vector<1x8x1xf32> to vector<8x1xf32>
      %120 = arith.mulf %114, %119 : vector<8x1xf32>
      %cst_67 = arith.constant dense<0.000000e+00> : vector<8xf32>
      %121 = vector.multi_reduction <add>, %117, %cst_67 [1] : vector<8x8xf32> to vector<8xf32>
      %122 = vector.shape_cast %121 : vector<8xf32> to vector<8x1xf32>
      %123 = arith.addf %120, %122 : vector<8x1xf32>
      %c2_68 = arith.constant 2 : index
      %c0_69 = arith.constant 0 : index
      %c0_70 = arith.constant 0 : index
      %124 = vector.load %arg10[%c2_68, %c0_69, %c0_70] : memref<4x8x1xf32, #tpu.memory_space<vmem>>, vector<1x8x1xf32>
      %125 = vector.shape_cast %124 : vector<1x8x1xf32> to vector<8x1xf32>
      %126 = vector.shape_cast %123 : vector<8x1xf32> to vector<1x8x1xf32>
      tpu.vector_store %arg10[%c2_68, %c0_69, %c0_70], %126 {strides = array<i32>} : memref<4x8x1xf32, #tpu.memory_space<vmem>>, vector<1x8x1xf32>,
      %c2_71 = arith.constant 2 : index
      %c0_72 = arith.constant 0 : index
      %c0_73 = arith.constant 0 : index
      %127 = vector.load %arg11[%c2_71, %c0_72, %c0_73] : memref<4x8x8xf32, #tpu.memory_space<vmem>>, vector<1x8x8xf32>
      %128 = vector.shape_cast %127 : vector<1x8x8xf32> to vector<8x8xf32>
      %129 = vector.broadcast %114 : vector<8x1xf32> to vector<8x8xf32>
      %130 = arith.mulf %129, %128 : vector<8x8xf32>
      %131 = arith.truncf %117 : vector<8x8xf32> to vector<8x8xbf16>
      %132 = vector.extract_strided_slice %17 {offsets = [0, 16], sizes = [8, 8], strides = [1, 1]} : vector<8x32xbf16> to vector<8x8xbf16>
      %cst_74 = arith.constant dense<0.000000e+00> : vector<8x8xf32>
      %133 = tpu.matmul %131, %132, %cst_74 {dimension_numbers = #tpu.dot_dimension_numbers<[1], [0], [0], [1], [0, 0, 1, 1], [], []>} : vector<8x8xbf16>, vector<8x8xbf16>, vector<8x8xf32> -> vector<8x8xf32>
      %134 = arith.addf %130, %133 : vector<8x8xf32>
      %c2_75 = arith.constant 2 : index
      %c0_76 = arith.constant 0 : index
      %c0_77 = arith.constant 0 : index
      %135 = vector.load %arg11[%c2_75, %c0_76, %c0_77] : memref<4x8x8xf32, #tpu.memory_space<vmem>>, vector<1x8x8xf32>
      %136 = vector.shape_cast %135 : vector<1x8x8xf32> to vector<8x8xf32>
      %137 = vector.shape_cast %134 : vector<8x8xf32> to vector<1x8x8xf32>
      tpu.vector_store %arg11[%c2_75, %c0_76, %c0_77], %137 {strides = array<i32>} : memref<4x8x8xf32, #tpu.memory_space<vmem>>, vector<1x8x8xf32>,
      %c2_78 = arith.constant 2 : index
      %c0_79 = arith.constant 0 : index
      %c0_80 = arith.constant 0 : index
      %138 = vector.load %arg9[%c2_78, %c0_79, %c0_80] : memref<4x8x1xf32, #tpu.memory_space<vmem>>, vector<1x8x1xf32>
      %139 = vector.shape_cast %138 : vector<1x8x1xf32> to vector<8x1xf32>
      %140 = vector.shape_cast %112 : vector<8x1xf32> to vector<1x8x1xf32>
      tpu.vector_store %arg9[%c2_78, %c0_79, %c0_80], %140 {strides = array<i32>} : memref<4x8x1xf32, #tpu.memory_space<vmem>>, vector<1x8x1xf32>,
      %141 = vector.extract_strided_slice %13 {offsets = [0, 24], sizes = [8, 8], strides = [1, 1]} : vector<8x32xbf16> to vector<8x8xbf16>
      %142 = vector.extract_strided_slice %15 {offsets = [0, 24], sizes = [8, 8], strides = [1, 1]} : vector<8x32xbf16> to vector<8x8xbf16>
      %cst_81 = arith.constant dense<0.000000e+00> : vector<8x8xf32>
      %143 = tpu.matmul %141, %142, %cst_81 {dimension_numbers = #tpu.dot_dimension_numbers<[1], [1], [0], [0], [0, 0, 1, 0], [], []>} : vector<8x8xbf16>, vector<8x8xbf16>, vector<8x8xf32> -> vector<8x8xf32>
      %cst_82 = arith.constant -1.000000e+30 : f32
      %144 = vector.broadcast %cst_82 : f32 to vector<8x8xf32>
      %145 = arith.select %26, %143, %144 : vector<8x8xi1>, vector<8x8xf32>
      %c3 = arith.constant 3 : index
      %c0_83 = arith.constant 0 : index
      %c0_84 = arith.constant 0 : index
      %146 = vector.load %arg9[%c3, %c0_83, %c0_84] : memref<4x8x1xf32, #tpu.memory_space<vmem>>, vector<1x8x1xf32>
      %147 = vector.shape_cast %146 : vector<1x8x1xf32> to vector<8x1xf32>
      %cst_85 = arith.constant dense<0xFF800000> : vector<8xf32>
      %148 = vector.multi_reduction <maximumf>, %145, %cst_85 [1] : vector<8x8xf32> to vector<8xf32>
      %149 = vector.shape_cast %148 : vector<8xf32> to vector<8x1xf32>
      %150 = arith.maximumf %147, %149 : vector<8x1xf32>
      %151 = arith.subf %147, %150 : vector<8x1xf32>
      %152 = math.exp %151 : vector<8x1xf32>
      %153 = vector.broadcast %150 : vector<8x1xf32> to vector<8x8xf32>
      %154 = arith.subf %145, %153 : vector<8x8xf32>
      %155 = math.exp %154 : vector<8x8xf32>
      %c3_86 = arith.constant 3 : index
      %c0_87 = arith.constant 0 : index
      %c0_88 = arith.constant 0 : index
      %156 = vector.load %arg10[%c3_86, %c0_87, %c0_88] : memref<4x8x1xf32, #tpu.memory_space<vmem>>, vector<1x8x1xf32>
      %157 = vector.shape_cast %156 : vector<1x8x1xf32> to vector<8x1xf32>
      %158 = arith.mulf %152, %157 : vector<8x1xf32>
      %cst_89 = arith.constant dense<0.000000e+00> : vector<8xf32>
      %159 = vector.multi_reduction <add>, %155, %cst_89 [1] : vector<8x8xf32> to vector<8xf32>
      %160 = vector.shape_cast %159 : vector<8xf32> to vector<8x1xf32>
      %161 = arith.addf %158, %160 : vector<8x1xf32>
      %c3_90 = arith.constant 3 : index
      %c0_91 = arith.constant 0 : index
      %c0_92 = arith.constant 0 : index
      %162 = vector.load %arg10[%c3_90, %c0_91, %c0_92] : memref<4x8x1xf32, #tpu.memory_space<vmem>>, vector<1x8x1xf32>
      %163 = vector.shape_cast %162 : vector<1x8x1xf32> to vector<8x1xf32>
      %164 = vector.shape_cast %161 : vector<8x1xf32> to vector<1x8x1xf32>
      tpu.vector_store %arg10[%c3_90, %c0_91, %c0_92], %164 {strides = array<i32>} : memref<4x8x1xf32, #tpu.memory_space<vmem>>, vector<1x8x1xf32>,
      %c3_93 = arith.constant 3 : index
      %c0_94 = arith.constant 0 : index
      %c0_95 = arith.constant 0 : index
      %165 = vector.load %arg11[%c3_93, %c0_94, %c0_95] : memref<4x8x8xf32, #tpu.memory_space<vmem>>, vector<1x8x8xf32>
      %166 = vector.shape_cast %165 : vector<1x8x8xf32> to vector<8x8xf32>
      %167 = vector.broadcast %152 : vector<8x1xf32> to vector<8x8xf32>
      %168 = arith.mulf %167, %166 : vector<8x8xf32>
      %169 = arith.truncf %155 : vector<8x8xf32> to vector<8x8xbf16>
      %170 = vector.extract_strided_slice %17 {offsets = [0, 24], sizes = [8, 8], strides = [1, 1]} : vector<8x32xbf16> to vector<8x8xbf16>
      %cst_96 = arith.constant dense<0.000000e+00> : vector<8x8xf32>
      %171 = tpu.matmul %169, %170, %cst_96 {dimension_numbers = #tpu.dot_dimension_numbers<[1], [0], [0], [1], [0, 0, 1, 1], [], []>} : vector<8x8xbf16>, vector<8x8xbf16>, vector<8x8xf32> -> vector<8x8xf32>
      %172 = arith.addf %168, %171 : vector<8x8xf32>
      %c3_97 = arith.constant 3 : index
      %c0_98 = arith.constant 0 : index
      %c0_99 = arith.constant 0 : index
      %173 = vector.load %arg11[%c3_97, %c0_98, %c0_99] : memref<4x8x8xf32, #tpu.memory_space<vmem>>, vector<1x8x8xf32>
      %174 = vector.shape_cast %173 : vector<1x8x8xf32> to vector<8x8xf32>
      %175 = vector.shape_cast %172 : vector<8x8xf32> to vector<1x8x8xf32>
      tpu.vector_store %arg11[%c3_97, %c0_98, %c0_99], %175 {strides = array<i32>} : memref<4x8x8xf32, #tpu.memory_space<vmem>>, vector<1x8x8xf32>,
      %c3_100 = arith.constant 3 : index
      %c0_101 = arith.constant 0 : index
      %c0_102 = arith.constant 0 : index
      %176 = vector.load %arg9[%c3_100, %c0_101, %c0_102] : memref<4x8x1xf32, #tpu.memory_space<vmem>>, vector<1x8x1xf32>
      %177 = vector.shape_cast %176 : vector<1x8x1xf32> to vector<8x1xf32>
      %178 = vector.shape_cast %150 : vector<8x1xf32> to vector<1x8x1xf32>
      tpu.vector_store %arg9[%c3_100, %c0_101, %c0_102], %178 {strides = array<i32>} : memref<4x8x1xf32, #tpu.memory_space<vmem>>, vector<1x8x1xf32>,
    } else {
    }
    %c0_i32_3 = arith.constant 0 : i32
    %9 = arith.cmpi eq, %arg2, %c0_i32_3 : i32
    %10 = arith.extui %9 : i1 to i32
    %c0_i32_4 = arith.constant 0 : i32
    %11 = arith.cmpi ne, %10, %c0_i32_4 : i32
    scf.if %11 {
      %c0 = arith.constant 0 : index
      %c0_5 = arith.constant 0 : index
      %c0_6 = arith.constant 0 : index
      %12 = vector.load %arg10[%c0, %c0_5, %c0_6] : memref<4x8x1xf32, #tpu.memory_space<vmem>>, vector<1x8x1xf32>
      %13 = vector.shape_cast %12 : vector<1x8x1xf32> to vector<8x1xf32>
      %14 = tpu.reciprocal %13 {approx = true} : vector<8x1xf32> -> vector<8x1xf32>
      %c0_7 = arith.constant 0 : index
      %c0_8 = arith.constant 0 : index
      %c0_9 = arith.constant 0 : index
      %15 = vector.load %arg11[%c0_7, %c0_8, %c0_9] : memref<4x8x8xf32, #tpu.memory_space<vmem>>, vector<1x8x8xf32>
      %16 = vector.shape_cast %15 : vector<1x8x8xf32> to vector<8x8xf32>
      %17 = vector.broadcast %14 : vector<8x1xf32> to vector<8x8xf32>
      %18 = arith.mulf %16, %17 : vector<8x8xf32>
      %c1 = arith.constant 1 : index
      %c0_10 = arith.constant 0 : index
      %c0_11 = arith.constant 0 : index
      %19 = vector.load %arg10[%c1, %c0_10, %c0_11] : memref<4x8x1xf32, #tpu.memory_space<vmem>>, vector<1x8x1xf32>
      %20 = vector.shape_cast %19 : vector<1x8x1xf32> to vector<8x1xf32>
      %21 = tpu.reciprocal %20 {approx = true} : vector<8x1xf32> -> vector<8x1xf32>
      %c1_12 = arith.constant 1 : index
      %c0_13 = arith.constant 0 : index
      %c0_14 = arith.constant 0 : index
      %22 = vector.load %arg11[%c1_12, %c0_13, %c0_14] : memref<4x8x8xf32, #tpu.memory_space<vmem>>, vector<1x8x8xf32>
      %23 = vector.shape_cast %22 : vector<1x8x8xf32> to vector<8x8xf32>
      %24 = vector.broadcast %21 : vector<8x1xf32> to vector<8x8xf32>
      %25 = arith.mulf %23, %24 : vector<8x8xf32>
      %c2 = arith.constant 2 : index
      %c0_15 = arith.constant 0 : index
      %c0_16 = arith.constant 0 : index
      %26 = vector.load %arg10[%c2, %c0_15, %c0_16] : memref<4x8x1xf32, #tpu.memory_space<vmem>>, vector<1x8x1xf32>
      %27 = vector.shape_cast %26 : vector<1x8x1xf32> to vector<8x1xf32>
      %28 = tpu.reciprocal %27 {approx = true} : vector<8x1xf32> -> vector<8x1xf32>
      %c2_17 = arith.constant 2 : index
      %c0_18 = arith.constant 0 : index
      %c0_19 = arith.constant 0 : index
      %29 = vector.load %arg11[%c2_17, %c0_18, %c0_19] : memref<4x8x8xf32, #tpu.memory_space<vmem>>, vector<1x8x8xf32>
      %30 = vector.shape_cast %29 : vector<1x8x8xf32> to vector<8x8xf32>
      %31 = vector.broadcast %28 : vector<8x1xf32> to vector<8x8xf32>
      %32 = arith.mulf %30, %31 : vector<8x8xf32>
      %c3 = arith.constant 3 : index
      %c0_20 = arith.constant 0 : index
      %c0_21 = arith.constant 0 : index
      %33 = vector.load %arg10[%c3, %c0_20, %c0_21] : memref<4x8x1xf32, #tpu.memory_space<vmem>>, vector<1x8x1xf32>
      %34 = vector.shape_cast %33 : vector<1x8x1xf32> to vector<8x1xf32>
      %35 = tpu.reciprocal %34 {approx = true} : vector<8x1xf32> -> vector<8x1xf32>
      %c3_22 = arith.constant 3 : index
      %c0_23 = arith.constant 0 : index
      %c0_24 = arith.constant 0 : index
      %36 = vector.load %arg11[%c3_22, %c0_23, %c0_24] : memref<4x8x8xf32, #tpu.memory_space<vmem>>, vector<1x8x8xf32>
      %37 = vector.shape_cast %36 : vector<1x8x8xf32> to vector<8x8xf32>
      %38 = vector.broadcast %35 : vector<8x1xf32> to vector<8x8xf32>
      %39 = arith.mulf %37, %38 : vector<8x8xf32>
      %40 = tpu.concatenate %18, %25, %32, %39 in 1 : vector<8x8xf32>, vector<8x8xf32>, vector<8x8xf32>, vector<8x8xf32> -> vector<8x32xf32>
      %41 = arith.truncf %40 : vector<8x32xf32> to vector<8x32xbf16>
      %c0_25 = arith.constant 0 : index
      %c0_26 = arith.constant 0 : index
      %42 = vector.load %arg6[%c0_25, %c0_26] : memref<32x32xbf16, #tpu.memory_space<vmem>>, vector<32x32xbf16>
      %cst = arith.constant dense<0.000000e+00> : vector<8x32xf32>
      %43 = tpu.matmul %41, %42, %cst {dimension_numbers = #tpu.dot_dimension_numbers<[1], [0], [0], [1], [0, 0, 1, 1], [], []>} : vector<8x32xbf16>, vector<32x32xbf16>, vector<8x32xf32> -> vector<8x32xf32>
      %c0_27 = arith.constant 0 : index
      %c0_28 = arith.constant 0 : index
      %44 = vector.load %arg7[%c0_27, %c0_28] : memref<1x32xf32, #tpu.memory_space<vmem>>, vector<1x32xf32>
      %45 = vector.broadcast %44 : vector<1x32xf32> to vector<8x32xf32>
      %46 = arith.addf %43, %45 : vector<8x32xf32>
      %c0_29 = arith.constant 0 : index
      %c0_30 = arith.constant 0 : index
      %c0_31 = arith.constant 0 : index
      %47 = vector.load %arg8[%c0_29, %c0_30, %c0_31] : memref<1x8x32xf32, #tpu.memory_space<vmem>>, vector<1x8x32xf32>
      %48 = vector.shape_cast %47 : vector<1x8x32xf32> to vector<8x32xf32>
      %49 = vector.shape_cast %46 : vector<8x32xf32> to vector<1x8x32xf32>
      tpu.vector_store %arg8[%c0_29, %c0_30, %c0_31], %49 {strides = array<i32>} : memref<1x8x32xf32, #tpu.memory_space<vmem>>, vector<1x8x32xf32>,
    } else {
    }
    return
  }
  func.func @transform_0(%arg0: i32, %arg1: i32, %arg2: i32) -> (i32, i32, i32) {
    %c0_i32 = arith.constant 0 : i32
    %c0_i32_0 = arith.constant 0 : i32
    return %arg0, %arg1, %c0_i32 : i32, i32, i32
  }
  func.func @transform_1(%arg0: i32, %arg1: i32, %arg2: i32) -> (i32, i32, i32) {
    %c0_i32 = arith.constant 0 : i32
    %c0_i32_0 = arith.constant 0 : i32
    return %arg0, %arg2, %c0_i32 : i32, i32, i32
  }
  func.func @transform_2(%arg0: i32, %arg1: i32, %arg2: i32) -> (i32, i32, i32) {
    %c0_i32 = arith.constant 0 : i32
    %c0_i32_0 = arith.constant 0 : i32
    return %arg0, %arg2, %c0_i32 : i32, i32, i32
  }
  func.func @transform_3(%arg0: i32, %arg1: i32, %arg2: i32) -> (i32, i32) {
    %c0_i32 = arith.constant 0 : i32
    %c0_i32_0 = arith.constant 0 : i32
    %c0_i32_1 = arith.constant 0 : i32
    return %c0_i32, %c0_i32_0 : i32, i32
  }
  func.func @transform_4(%arg0: i32, %arg1: i32, %arg2: i32) -> (i32, i32) {
    %c0_i32 = arith.constant 0 : i32
    %c0_i32_0 = arith.constant 0 : i32
    %c0_i32_1 = arith.constant 0 : i32
    return %c0_i32, %c0_i32_0 : i32, i32
  }
  func.func @transform_5(%arg0: i32, %arg1: i32, %arg2: i32) -> (i32, i32, i32) {
    %c0_i32 = arith.constant 0 : i32
    %c0_i32_0 = arith.constant 0 : i32
    return %arg0, %arg1, %c0_i32 : i32, i32, i32
  }
}

</mosaic_0001>

<llo_original>
// kernel: multi_head_attention.2
$region0: #{multi_head_attention.2}
  #allocation0 [shape = 'u32[]', space=smem, size = 0x4, offset = 0x4, fixed_abs, tag = 'smem constant byte address 0x4 - core index']
  #allocation1 [shape = 'u32[144,128]{1,0:T(1,128)}', space=vmem, size = 0x12000, scoped, tag = 'internal scratch']
  %s0 = inlined_call_operand.vmem [shape: f32[2,8,32], index: 0, kind: input, shape index: {}]
  %s1 = inlined_call_operand.vmem [shape: bf16[32,96], index: 1, kind: input, shape index: {}]
  %s2 = inlined_call_operand.vmem [shape: bf16[2,8,32], index: 2, kind: output, shape index: {0}]
  %s3 = inlined_call_operand.vmem [shape: bf16[2,8,32], index: 3, kind: output, shape index: {1}]
  %s4 = inlined_call_operand.vmem [shape: bf16[2,8,32], index: 4, kind: output, shape index: {2}]
  %5 = xla_tuple %s2, %s3, %s4
  %s6 = sld [smem:[#allocation0]]
  $region57: #{multi_head_attention.2} parent=0
    _
  %s8 = ssub.s32 1, %s6
  %s9 = scalar_select 0, %s8, %s6
  loop: start=0, step=1, limit=4
  $region2: #{multi_head_attention.2} parent=0 // loop_pre_header
    _
  $region3: #{multi_head_attention.2} parent=0 // loop_header
    %s11 = sphi 0, %s15
    %p12 = scmp.ge.s32.totalorder %s11, 4
    %s18 = sphi 0, %s30
    %s19 = sphi 0, %s26
    %s20 = sphi 0, %s18
    %s21 = sphi 0, %s19
    %s22 = sphi 0, %s20
    %s23 = sphi 0, %s21
    %s35 = sphi 0, %s37
    %s38 = sphi 0, %s35
    %s39 = sphi 0, %s38
    %s55 = sphi 0, %s39
    %s59 = sphi 0, %s59
    %s61 = sphi 0, %s59
    %s62 = sphi 0, %s61
    %s76 = sphi 0, %s62
    %s84 = sphi 0, %s86
    %s87 = sphi 0, %s84
    %s88 = sphi 0, %s87
    %s104 = sphi 0, %s88
    %s112 = sphi 0, %s114
    %s115 = sphi 0, %s112
    %s116 = sphi 0, %s115
    %s132 = sphi 0, %s116
    %s140 = sphi 0, %s142
    %s143 = sphi 0, %s140
    %s144 = sphi 0, %s143
    %s160 = sphi 0, %s144
  $region4: #{multi_head_attention.2} parent=0 // loop_header_branch
    %14 = sbr.rel (%p12) target = $region8
  $region5: #{multi_head_attention.2} parent=0 // loop_body
    %s16 = ssub.s32 %s11, 1
    %s17 = ssub.s32 %s11, 2
    %s24 = sadd.s32 1, %s19
    %p25 = scmp.ge.s32.totalorder %s24, 1
    %s26 = scalar_select %p25, 0, %s24
    %s27 = sadd.s32 1, %s18
    %s28 = scalar_select %p25, %s27, %s18
    %p29 = scmp.ge.s32.totalorder %s28, 2
    %s30 = scalar_select %p29, 0, %s28
    %s31 = ssub.s32 %s18, %s30
    %s32 = ssub.s32 %s19, %s26
    %s33 = sor.u32 %s31, %s32
    %p34 = scmp.eq.s32.totalorder %s33, 0
    %s36 = sadd.s32 %s35, 1
    %s37 = scalar_select %p34, %s35, %s36
    %p40 = pneg %p34
    %p41 = scmp.eq.s32.totalorder %s11, 1
    %p42 = por %p40, %p41
    %p43 = scmp.ne.s32.totalorder %s35, %s38
    %p44 = scmp.eq.s32.totalorder %s11, 0
    %p45 = por %p43, %p44
    %p46 = scmp.ne.s32.totalorder %s35, %s38
    %p47 = scmp.eq.s32.totalorder %s16, 1
    %p48 = por %p46, %p47
    %p49 = scmp.ne.s32.totalorder %s38, %s39
    %p50 = scmp.eq.s32.totalorder %s16, 0
    %p51 = por %p49, %p50
    %p52 = scmp.ne.s32.totalorder %s38, %s39
    %p53 = scmp.eq.s32.totalorder %s17, 1
    %p54 = por %p52, %p53
    %p56 = scmp.ne.s32.totalorder %s39, %s55
    %p57 = scmp.eq.s32.totalorder %s17, 0
    %p58 = por %p56, %p57
    %s60 = sadd.s32 %s59, 1
    %p63 = scmp.eq.s32.totalorder %s11, 1
    %p64 = scmp.ne.s32.totalorder %s59, %s61
    %p65 = scmp.eq.s32.totalorder %s11, 0
    %p66 = por %p64, %p65
    %p67 = scmp.ne.s32.totalorder %s59, %s61
    %p68 = scmp.eq.s32.totalorder %s16, 1
    %p69 = por %p67, %p68
    %p70 = scmp.ne.s32.totalorder %s61, %s62
    %p71 = scmp.eq.s32.totalorder %s16, 0
    %p72 = por %p70, %p71
    %p73 = scmp.ne.s32.totalorder %s61, %s62
    %p74 = scmp.eq.s32.totalorder %s17, 1
    %p75 = por %p73, %p74
    %p77 = scmp.ne.s32.totalorder %s62, %s76
    %p78 = scmp.eq.s32.totalorder %s17, 0
    %p79 = por %p77, %p78
    %s80 = ssub.s32 %s18, %s30
    %s81 = ssub.s32 %s19, %s26
    %s82 = sor.u32 %s80, %s81
    %p83 = scmp.eq.s32.totalorder %s82, 0
    %s85 = sadd.s32 %s84, 1
    %s86 = scalar_select %p83, %s84, %s85
    %p89 = pneg %p83
    %p90 = scmp.eq.s32.totalorder %s11, 1
    %p91 = por %p89, %p90
    %p92 = scmp.ne.s32.totalorder %s84, %s87
    %p93 = scmp.eq.s32.totalorder %s11, 0
    %p94 = por %p92, %p93
    %p95 = scmp.ne.s32.totalorder %s84, %s87
    %p96 = scmp.eq.s32.totalorder %s16, 1
    %p97 = por %p95, %p96
    %p98 = scmp.ne.s32.totalorder %s87, %s88
    %p99 = scmp.eq.s32.totalorder %s16, 0
    %p100 = por %p98, %p99
    %p101 = scmp.ne.s32.totalorder %s87, %s88
    %p102 = scmp.eq.s32.totalorder %s17, 1
    %p103 = por %p101, %p102
    %p105 = scmp.ne.s32.totalorder %s88, %s104
    %p106 = scmp.eq.s32.totalorder %s17, 0
    %p107 = por %p105, %p106
    %s108 = ssub.s32 %s18, %s30
    %s109 = ssub.s32 %s19, %s26
    %s110 = sor.u32 %s108, %s109
    %p111 = scmp.eq.s32.totalorder %s110, 0
    %s113 = sadd.s32 %s112, 1
    %s114 = scalar_select %p111, %s112, %s113
    %p117 = pneg %p111
    %p118 = scmp.eq.s32.totalorder %s11, 1
    %p119 = por %p117, %p118
    %p120 = scmp.ne.s32.totalorder %s112, %s115
    %p121 = scmp.eq.s32.totalorder %s11, 0
    %p122 = por %p120, %p121
    %p123 = scmp.ne.s32.totalorder %s112, %s115
    %p124 = scmp.eq.s32.totalorder %s16, 1
    %p125 = por %p123, %p124
    %p126 = scmp.ne.s32.totalorder %s115, %s116
    %p127 = scmp.eq.s32.totalorder %s16, 0
    %p128 = por %p126, %p127
    %p129 = scmp.ne.s32.totalorder %s115, %s116
    %p130 = scmp.eq.s32.totalorder %s17, 1
    %p131 = por %p129, %p130
    %p133 = scmp.ne.s32.totalorder %s116, %s132
    %p134 = scmp.eq.s32.totalorder %s17, 0
    %p135 = por %p133, %p134
    %s136 = ssub.s32 %s18, %s30
    %s137 = ssub.s32 %s19, %s26
    %s138 = sor.u32 %s136, %s137
    %p139 = scmp.eq.s32.totalorder %s138, 0
    %s141 = sadd.s32 %s140, 1
    %s142 = scalar_select %p139, %s140, %s141
    %p145 = pneg %p139
    %p146 = scmp.eq.s32.totalorder %s11, 1
    %p147 = por %p145, %p146
    %p148 = scmp.ne.s32.totalorder %s140, %s143
    %p149 = scmp.eq.s32.totalorder %s11, 0
    %p150 = por %p148, %p149
    %p151 = scmp.ne.s32.totalorder %s140, %s143
    %p152 = scmp.eq.s32.totalorder %s16, 1
    %p153 = por %p151, %p152
    %p154 = scmp.ne.s32.totalorder %s143, %s144
    %p155 = scmp.eq.s32.totalorder %s16, 0
    %p156 = por %p154, %p155
    %p157 = scmp.ne.s32.totalorder %s143, %s144
    %p158 = scmp.eq.s32.totalorder %s17, 1
    %p159 = por %p157, %p158
    %p161 = scmp.ne.s32.totalorder %s144, %s160
    %p162 = scmp.eq.s32.totalorder %s17, 0
    %p163 = por %p161, %p162
    %p164 = scmp.le.s32.totalorder 1, %s11
    %p165 = scmp.lt.s32.totalorder %s11, 3
    %p166 = pnand %p164, %p165
    %p167 = pneg %p166
    // Predicated region
    $region9: #{multi_head_attention.2} parent=5 // pred_check
      _
    $region10: #{multi_head_attention.2} parent=5 // pred_check_branch
      %169 = sbr.rel (%p166) target = $region12
    $region11: #{multi_head_attention.2} parent=5 // pred_region
      %s170 = ssub.s32 %s11, 1
      // Predicated region
      $region13: #{multi_head_attention.2} parent=11 // pred_check
        %p171 = pneg %p72
      $region14: #{multi_head_attention.2} parent=11 // pred_check_branch
        %173 = sbr.rel (%p171) target = $region16
      $region15: #{multi_head_attention.2} parent=11 // pred_region
        _
      $region16: #{multi_head_attention.2} parent=11 // pred_fallthru
        _
    $region12: #{multi_head_attention.2} parent=5 // pred_fallthru
      _
    %p174 = scmp.lt.s32.totalorder %s11, 2
    // Predicated region
    $region17: #{multi_head_attention.2} parent=5 // pred_check
      %p175 = pneg %p174
    $region18: #{multi_head_attention.2} parent=5 // pred_check_branch
      %177 = sbr.rel (%p175) target = $region20
    $region19: #{multi_head_attention.2} parent=5 // pred_region
      // Predicated region
      $region21: #{multi_head_attention.2} parent=19 // pred_check
        %p178 = pneg %p45
      $region22: #{multi_head_attention.2} parent=19 // pred_check_branch
        %180 = sbr.rel (%p178) target = $region24
      $region23: #{multi_head_attention.2} parent=19 // pred_region
        %p181 = scmp.lt.s32.totalorder %s18, 1
        %s182 = scalar_select %p181, %s18, 1
        %p183 = scmp.lt.s32.totalorder %s19, 0
        %s184 = scalar_select %p183, %s19, 0
        %s185 = sadd.s32 %s184, %s182
        %s186 = smul.addr %s185, 8
        %s187 = scalar_lea.vmem %s0, %s186
      $region24: #{multi_head_attention.2} parent=19 // pred_fallthru
        _
    $region20: #{multi_head_attention.2} parent=5 // pred_fallthru
      _
    %p188 = scmp.le.s32.totalorder 1, %s11
    %p189 = scmp.lt.s32.totalorder %s11, 3
    %p190 = pnand %p188, %p189
    %p191 = pneg %p190
    // Predicated region
    $region25: #{multi_head_attention.2} parent=5 // pred_check
      _
    $region26: #{multi_head_attention.2} parent=5 // pred_check_branch
      %193 = sbr.rel (%p190) target = $region28
    $region27: #{multi_head_attention.2} parent=5 // pred_region
      %s194 = ssub.s32 %s11, 1
      %p195 = scmp.lt.s32.totalorder %s20, 1
      %s196 = scalar_select %p195, %s20, 1
      %p197 = scmp.lt.s32.totalorder %s21, 0
      %s198 = scalar_select %p197, %s21, 0
      %s199 = sadd.s32 %s198, %s196
      %s200 = smul.addr %s199, 8
      %s201 = scalar_lea.vmem %s0, %s200
      %p202 = pneg %p51
      %p203 = pneg %p48
      %p204 = pneg %p72
      %p205 = pneg %p69
      %p206 = pneg %p100
      %p207 = pneg %p97
      %p208 = scmp.lt.s32.totalorder %s20, 1
      %s209 = scalar_select %p208, %s20, 1
      %p210 = scmp.lt.s32.totalorder %s21, 0
      %s211 = scalar_select %p210, %s21, 0
      %s212 = sadd.s32 %s211, %s209
      %s213 = smul.addr %s212, 4
      %s214 = scalar_lea.vmem %s2, %s213
      %p215 = pneg %p128
      %p216 = pneg %p125
      %p217 = scmp.lt.s32.totalorder %s20, 1
      %s218 = scalar_select %p217, %s20, 1
      %p219 = scmp.lt.s32.totalorder %s21, 0
      %s220 = scalar_select %p219, %s21, 0
      %s221 = sadd.s32 %s220, %s218
      %s222 = smul.addr %s221, 4
      %s223 = scalar_lea.vmem %s3, %s222
      %p224 = pneg %p156
      %p225 = pneg %p153
      %p226 = scmp.lt.s32.totalorder %s20, 1
      %s227 = scalar_select %p226, %s20, 1
      %p228 = scmp.lt.s32.totalorder %s21, 0
      %s229 = scalar_select %p228, %s21, 0
      %s230 = sadd.s32 %s229, %s227
      %s231 = smul.addr %s230, 4
      %s232 = scalar_lea.vmem %s4, %s231
      %p233 = scmp.lt.s32.totalorder %s20, 1
      %s234 = scalar_select %p233, %s20, 1
      %p235 = scmp.lt.s32.totalorder %s21, 0
      %s236 = scalar_select %p235, %s21, 0
      %s237 = sadd.s32 %s236, %s234
      %s238 = smul.addr %s237, 8
      %s239 = scalar_lea.vmem %s0, %s238
      %p240 = scmp.lt.s32.totalorder %s20, 1
      %s241 = scalar_select %p240, %s20, 1
      %p242 = scmp.lt.s32.totalorder %s21, 0
      %s243 = scalar_select %p242, %s21, 0
      %s244 = sadd.s32 %s243, %s241
      %s245 = smul.addr %s244, 4
      %s246 = scalar_lea.vmem %s2, %s245
      %p247 = scmp.lt.s32.totalorder %s20, 1
      %s248 = scalar_select %p247, %s20, 1
      %p249 = scmp.lt.s32.totalorder %s21, 0
      %s250 = scalar_select %p249, %s21, 0
      %s251 = sadd.s32 %s250, %s248
      %s252 = smul.addr %s251, 4
      %s253 = scalar_lea.vmem %s3, %s252
      %p254 = scmp.lt.s32.totalorder %s20, 1
      %s255 = scalar_select %p254, %s20, 1
      %p256 = scmp.lt.s32.totalorder %s21, 0
      %s257 = scalar_select %p256, %s21, 0
      %s258 = sadd.s32 %s257, %s255
      %s259 = smul.addr %s258, 4
      %s260 = scalar_lea.vmem %s4, %s259
      %v262 = vld [vmem:[%s239] sm:$0xff]
      %v263 = vpack.c.bf16 %v262, %v262
      %v264 = vld [vmem:[%s1] sm:$0xf]
      %v265 = vld [vmem:[%s1 + $0x4] sm:$0xf]
      %v266 = vld [vmem:[%s1 + $0x8] sm:$0xf]
      %v267 = vld [vmem:[%s1 + $0xc] sm:$0xf]
      %v272 = vunpack.c.l.b16 %v264
      %v273 = vunpack.c.l.b16 %v265
      %v274 = vunpack.c.l.b16 %v266
      %v275 = vunpack.c.l.b16 %v267
      %v276 = vpack.c.b16 %v273, %v272
      %v277 = vpack.c.b16 %v275, %v274
      %vm280 = vcmask 261120
      %v282 = vsel %vm280, %v263, 0
      %284 = vmatprep.subr.bf16.mxu0 0
      %285 = vmatpush1.bf16.msra.mxu0 0
      %286 = vmatprep.subr.bf16.mxu0 0
      %287 = vmatpush1.bf16.msra.mxu0 0
      %288 = vmatprep.subr.bf16.mxu0 0
      %289 = vmatpush1.bf16.msra.mxu0 0
      %290 = vmatprep.subr.bf16.mxu0 0
      %291 = vmatpush1.bf16.msra.mxu0 0
      %292 = vmatprep.subr.bf16.mxu0 0
      %293 = vmatpush1.bf16.msra.mxu0 0
      %294 = vmatprep.subr.bf16.mxu0 0
      %295 = vmatpush1.bf16.msra.mxu0 0
      %296 = vmatprep.subr.bf16.mxu0 0
      %297 = vmatpush1.bf16.msra.mxu0 %v277
      %298 = vmatprep.subr.bf16.mxu0 0
      %299 = vmatpush1.bf16.msra.mxu0 %v276
      %300 = vmatprep.subr.bf16.mxu0 0
      %301 = vmatpush2.bf16.msra.mxu0 0
      %302 = vmatprep.subr.bf16.mxu0 0
      %303 = vmatpush2.bf16.msra.mxu0 0
      %304 = vmatprep.subr.bf16.mxu0 0
      %305 = vmatpush2.bf16.msra.mxu0 0
      %306 = vmatprep.subr.bf16.mxu0 0
      %307 = vmatpush2.bf16.msra.mxu0 0
      %308 = vmatprep.subr.bf16.mxu0 0
      %309 = vmatpush2.bf16.msra.mxu0 0
      %310 = vmatprep.subr.bf16.mxu0 0
      %311 = vmatpush2.bf16.msra.mxu0 0
      %312 = vmatprep.subr.bf16.mxu0 0
      %313 = vmatpush2.bf16.msra.mxu0 0
      %314 = vmatprep.subr.bf16.mxu0 0
      %315 = vmatpush2.bf16.msra.mxu0 0
      %316 = vmatprep.mubr.bf16.mxu0 0
      %317 = vmatmul.mubr.bf16.gmra.mxu0 %v282
      %v318 = vpop.f32.mrf.mxu0
      %v319 = vadd.f32 0.0, %v318
      %v320 = vpop.f32.mrf.mxu0
      %v321 = vpop.f32.mrf.mxu0
      %v322 = vpop.f32.mrf.mxu0
      %323 = vdwg.mxu0
      %v324 = vmul.f32 %v319, 0.35355338
      %v325 = vpack.c.bf16 %v324, %v324
      %vm326 = vcmask 257024
      %327 = vst.msk [vmem:[%s246] sm:$0xf] %vm326, %v325
      %v328 = vpack.c.bf16 %v319, %v319
      %v330 = vunpack.c.l.b16 %v328
      %v331 = vpack.c.b16 %v330, %v330
      %332 = vrot.lane.b32.xlu0 %v331, 96
      %v333 = vpop.permute.xlu0 %332
      %335 = vst.msk [vmem:[%s253] sm:$0xf] %vm326, %v333
      %336 = vrot.lane.b32.xlu0 %v331, 64
      %v337 = vpop.permute.xlu0 %336
      %339 = vst.msk [vmem:[%s260] sm:$0xf] %vm326, %v337
      %p340 = scmp.lt.s32.totalorder %s20, 1
      %s341 = scalar_select %p340, %s20, 1
      %p342 = scmp.lt.s32.totalorder %s21, 0
      %s343 = scalar_select %p342, %s21, 0
      %s344 = sadd.s32 %s343, %s341
      %s345 = smul.addr %s344, 4
      %s346 = scalar_lea.vmem %s2, %s345
      %p347 = scmp.lt.s32.totalorder %s20, 1
      %s348 = scalar_select %p347, %s20, 1
      %p349 = scmp.lt.s32.totalorder %s21, 0
      %s350 = scalar_select %p349, %s21, 0
      %s351 = sadd.s32 %s350, %s348
      %s352 = smul.addr %s351, 4
      %s353 = scalar_lea.vmem %s3, %s352
      %p354 = scmp.lt.s32.totalorder %s20, 1
      %s355 = scalar_select %p354, %s20, 1
      %p356 = scmp.lt.s32.totalorder %s21, 0
      %s357 = scalar_select %p356, %s21, 0
      %s358 = sadd.s32 %s357, %s355
      %s359 = smul.addr %s358, 4
      %s360 = scalar_lea.vmem %s4, %s359
      // Predicated region
      $region29: #{multi_head_attention.2} parent=27 // pred_check
        %p361 = pneg %p97
      $region30: #{multi_head_attention.2} parent=27 // pred_check_branch
        %363 = sbr.rel (%p361) target = $region32
      $region31: #{multi_head_attention.2} parent=27 // pred_region
        _
      $region32: #{multi_head_attention.2} parent=27 // pred_fallthru
        _
      // Predicated region
      $region33: #{multi_head_attention.2} parent=27 // pred_check
        %p364 = pneg %p125
      $region34: #{multi_head_attention.2} parent=27 // pred_check_branch
        %366 = sbr.rel (%p364) target = $region36
      $region35: #{multi_head_attention.2} parent=27 // pred_region
        _
      $region36: #{multi_head_attention.2} parent=27 // pred_fallthru
        _
      // Predicated region
      $region37: #{multi_head_attention.2} parent=27 // pred_check
        %p367 = pneg %p153
      $region38: #{multi_head_attention.2} parent=27 // pred_check_branch
        %369 = sbr.rel (%p367) target = $region40
      $region39: #{multi_head_attention.2} parent=27 // pred_region
        _
      $region40: #{multi_head_attention.2} parent=27 // pred_fallthru
        _
    $region28: #{multi_head_attention.2} parent=5 // pred_fallthru
      _
    %p370 = scmp.le.s32.totalorder 2, %s11
    // Predicated region
    $region41: #{multi_head_attention.2} parent=5 // pred_check
      %p371 = pneg %p370
    $region42: #{multi_head_attention.2} parent=5 // pred_check_branch
      %373 = sbr.rel (%p371) target = $region44
    $region43: #{multi_head_attention.2} parent=5 // pred_region
      %s374 = ssub.s32 %s11, 2
      // Predicated region
      $region45: #{multi_head_attention.2} parent=43 // pred_check
        %p375 = pneg %p103
      $region46: #{multi_head_attention.2} parent=43 // pred_check_branch
        %377 = sbr.rel (%p375) target = $region48
      $region47: #{multi_head_attention.2} parent=43 // pred_region
        %p378 = scmp.lt.s32.totalorder %s22, 1
        %s379 = scalar_select %p378, %s22, 1
        %p380 = scmp.lt.s32.totalorder %s23, 0
        %s381 = scalar_select %p380, %s23, 0
        %s382 = sadd.s32 %s381, %s379
        %s383 = smul.addr %s382, 4
        %s384 = scalar_lea.vmem %s2, %s383
      $region48: #{multi_head_attention.2} parent=43 // pred_fallthru
        _
      // Predicated region
      $region49: #{multi_head_attention.2} parent=43 // pred_check
        %p385 = pneg %p131
      $region50: #{multi_head_attention.2} parent=43 // pred_check_branch
        %387 = sbr.rel (%p385) target = $region52
      $region51: #{multi_head_attention.2} parent=43 // pred_region
        %p388 = scmp.lt.s32.totalorder %s22, 1
        %s389 = scalar_select %p388, %s22, 1
        %p390 = scmp.lt.s32.totalorder %s23, 0
        %s391 = scalar_select %p390, %s23, 0
        %s392 = sadd.s32 %s391, %s389
        %s393 = smul.addr %s392, 4
        %s394 = scalar_lea.vmem %s3, %s393
      $region52: #{multi_head_attention.2} parent=43 // pred_fallthru
        _
      // Predicated region
      $region53: #{multi_head_attention.2} parent=43 // pred_check
        %p395 = pneg %p159
      $region54: #{multi_head_attention.2} parent=43 // pred_check_branch
        %397 = sbr.rel (%p395) target = $region56
      $region55: #{multi_head_attention.2} parent=43 // pred_region
        %p398 = scmp.lt.s32.totalorder %s22, 1
        %s399 = scalar_select %p398, %s22, 1
        %p400 = scmp.lt.s32.totalorder %s23, 0
        %s401 = scalar_select %p400, %s23, 0
        %s402 = sadd.s32 %s401, %s399
        %s403 = smul.addr %s402, 4
        %s404 = scalar_lea.vmem %s4, %s403
      $region56: #{multi_head_attention.2} parent=43 // pred_fallthru
        _
    $region44: #{multi_head_attention.2} parent=5 // pred_fallthru
      _
  $region6: #{multi_head_attention.2} parent=0 // loop_footer
    %s15 = sadd.s32 1, %s11
  $region7: #{multi_head_attention.2} parent=0 // loop_footer_branch
    %10 = sbr.rel target = $region3
  $region8: #{multi_head_attention.2} parent=0 // loop_exit
    _

// kernel: multi_head_attention.3
$region0: #{multi_head_attention.3}
  #allocation0 [shape = 'u32[]', space=smem, size = 0x4, offset = 0x4, fixed_abs, tag = 'smem constant byte address 0x4 - core index']
  #allocation1 [shape = 'u32[144,128]{1,0:T(1,128)}', space=vmem, size = 0x12000, scoped, tag = 'internal scratch']
  #allocation2 [shape = 'f32[4,8,1]{2,1,0:T(8,128)}', space=vmem, size = 0x4000, scoped, tag = 'scratch operand']
  #allocation3 [shape = 'f32[4,8,1]{2,1,0:T(8,128)}', space=vmem, size = 0x4000, scoped, tag = 'scratch operand']
  #allocation4 [shape = 'f32[4,8,8]{2,1,0:T(8,128)}', space=vmem, size = 0x4000, scoped, tag = 'scratch operand']
  %s0 = inlined_call_operand.vmem [shape: bf16[2,8,32], index: 0, kind: input, shape index: {}]
  %s1 = inlined_call_operand.vmem [shape: bf16[2,8,32], index: 1, kind: input, shape index: {}]
  %s2 = inlined_call_operand.vmem [shape: bf16[2,8,32], index: 2, kind: input, shape index: {}]
  %s3 = inlined_call_operand.vmem [shape: bf16[32,32], index: 3, kind: input, shape index: {}]
  %s4 = inlined_call_operand.vmem [shape: f32[1,32], index: 4, kind: input, shape index: {}]
  %s5 = inlined_call_operand.hbm [shape: f32[2,8,32], index: 5, kind: output, shape index: {}]
  %s6 = sld [smem:[#allocation0]]
  $region65: #{multi_head_attention.3} parent=0
    _
  %s8 = ssub.s32 1, %s6
  %s9 = scalar_select 0, %s8, %s6
  $region1: #{multi_head_attention.3} parent=0
    #allocation5 [shape = 'u8[8192]{0}', space=vmem, size = 0x2000, scoped, tag = 'output window, operand 0']
    #allocation6 [shape = 's32[2]{0}', space=sflag, size = 0x8, scoped, tag = 'scoped memory for multi_head_attention.3']
    %10 = vsyncpa [#allocation6], 0
    %s11 = scalar_lea.sflag [#allocation6], 1
    %12 = vsyncpa %s11, 0
    loop: start=0, step=1, limit=4
    $region2: #{multi_head_attention.3} parent=1 // loop_pre_header
      _
    $region3: #{multi_head_attention.3} parent=1 // loop_header
      %s14 = sphi 0, %s18
      %p15 = scmp.ge.s32.totalorder %s14, 4
      %s21 = sphi 0, %s40
      %s22 = sphi 0, %s36
      %s23 = sphi 0, %s32
      %s24 = sphi 0, %s21
      %s25 = sphi 0, %s22
      %s26 = sphi 0, %s23
      %s27 = sphi 0, %s24
      %s28 = sphi 0, %s25
      %s29 = sphi 0, %s26
      %s45 = sphi 0, %s47
      %s48 = sphi 0, %s45
      %s49 = sphi 0, %s48
      %s65 = sphi 0, %s49
      %s73 = sphi 0, %s75
      %s76 = sphi 0, %s73
      %s77 = sphi 0, %s76
      %s93 = sphi 0, %s77
      %s101 = sphi 0, %s103
      %s104 = sphi 0, %s101
      %s105 = sphi 0, %s104
      %s121 = sphi 0, %s105
      %s125 = sphi 0, %s125
      %s127 = sphi 0, %s125
      %s128 = sphi 0, %s127
      %s142 = sphi 0, %s128
      %s146 = sphi 0, %s146
      %s148 = sphi 0, %s146
      %s149 = sphi 0, %s148
      %s163 = sphi 0, %s149
      %s171 = sphi 0, %s173
      %s174 = sphi 0, %s171
      %s175 = sphi 0, %s174
      %s191 = sphi 0, %s175
    $region4: #{multi_head_attention.3} parent=1 // loop_header_branch
      %17 = sbr.rel (%p15) target = $region8
    $region5: #{multi_head_attention.3} parent=1 // loop_body
      %s19 = ssub.s32 %s14, 1
      %s20 = ssub.s32 %s14, 2
      %s30 = sadd.s32 1, %s23
      %p31 = scmp.ge.s32.totalorder %s30, 1
      %s32 = scalar_select %p31, 0, %s30
      %s33 = sadd.s32 1, %s22
      %s34 = scalar_select %p31, %s33, %s22
      %p35 = scmp.ge.s32.totalorder %s34, 1
      %s36 = scalar_select %p35, 0, %s34
      %s37 = sadd.s32 1, %s21
      %s38 = scalar_select %p35, %s37, %s21
      %p39 = scmp.ge.s32.totalorder %s38, 2
      %s40 = scalar_select %p39, 0, %s38
      %s41 = ssub.s32 %s21, %s40
      %s42 = ssub.s32 %s22, %s36
      %s43 = sor.u32 %s41, %s42
      %p44 = scmp.eq.s32.totalorder %s43, 0
      %s46 = sadd.s32 %s45, 1
      %s47 = scalar_select %p44, %s45, %s46
      %p50 = pneg %p44
      %p51 = scmp.eq.s32.totalorder %s14, 1
      %p52 = por %p50, %p51
      %p53 = scmp.ne.s32.totalorder %s45, %s48
      %p54 = scmp.eq.s32.totalorder %s14, 0
      %p55 = por %p53, %p54
      %p56 = scmp.ne.s32.totalorder %s45, %s48
      %p57 = scmp.eq.s32.totalorder %s19, 1
      %p58 = por %p56, %p57
      %p59 = scmp.ne.s32.totalorder %s48, %s49
      %p60 = scmp.eq.s32.totalorder %s19, 0
      %p61 = por %p59, %p60
      %p62 = scmp.ne.s32.totalorder %s48, %s49
      %p63 = scmp.eq.s32.totalorder %s20, 1
      %p64 = por %p62, %p63
      %p66 = scmp.ne.s32.totalorder %s49, %s65
      %p67 = scmp.eq.s32.totalorder %s20, 0
      %p68 = por %p66, %p67
      %s69 = ssub.s32 %s21, %s40
      %s70 = ssub.s32 %s23, %s32
      %s71 = sor.u32 %s69, %s70
      %p72 = scmp.eq.s32.totalorder %s71, 0
      %s74 = sadd.s32 %s73, 1
      %s75 = scalar_select %p72, %s73, %s74
      %p78 = pneg %p72
      %p79 = scmp.eq.s32.totalorder %s14, 1
      %p80 = por %p78, %p79
      %p81 = scmp.ne.s32.totalorder %s73, %s76
      %p82 = scmp.eq.s32.totalorder %s14, 0
      %p83 = por %p81, %p82
      %p84 = scmp.ne.s32.totalorder %s73, %s76
      %p85 = scmp.eq.s32.totalorder %s19, 1
      %p86 = por %p84, %p85
      %p87 = scmp.ne.s32.totalorder %s76, %s77
      %p88 = scmp.eq.s32.totalorder %s19, 0
      %p89 = por %p87, %p88
      %p90 = scmp.ne.s32.totalorder %s76, %s77
      %p91 = scmp.eq.s32.totalorder %s20, 1
      %p92 = por %p90, %p91
      %p94 = scmp.ne.s32.totalorder %s77, %s93
      %p95 = scmp.eq.s32.totalorder %s20, 0
      %p96 = por %p94, %p95
      %s97 = ssub.s32 %s21, %s40
      %s98 = ssub.s32 %s23, %s32
      %s99 = sor.u32 %s97, %s98
      %p100 = scmp.eq.s32.totalorder %s99, 0
      %s102 = sadd.s32 %s101, 1
      %s103 = scalar_select %p100, %s101, %s102
      %p106 = pneg %p100
      %p107 = scmp.eq.s32.totalorder %s14, 1
      %p108 = por %p106, %p107
      %p109 = scmp.ne.s32.totalorder %s101, %s104
      %p110 = scmp.eq.s32.totalorder %s14, 0
      %p111 = por %p109, %p110
      %p112 = scmp.ne.s32.totalorder %s101, %s104
      %p113 = scmp.eq.s32.totalorder %s19, 1
      %p114 = por %p112, %p113
      %p115 = scmp.ne.s32.totalorder %s104, %s105
      %p116 = scmp.eq.s32.totalorder %s19, 0
      %p117 = por %p115, %p116
      %p118 = scmp.ne.s32.totalorder %s104, %s105
      %p119 = scmp.eq.s32.totalorder %s20, 1
      %p120 = por %p118, %p119
      %p122 = scmp.ne.s32.totalorder %s105, %s121
      %p123 = scmp.eq.s32.totalorder %s20, 0
      %p124 = por %p122, %p123
      %s126 = sadd.s32 %s125, 1
      %p129 = scmp.eq.s32.totalorder %s14, 1
      %p130 = scmp.ne.s32.totalorder %s125, %s127
      %p131 = scmp.eq.s32.totalorder %s14, 0
      %p132 = por %p130, %p131
      %p133 = scmp.ne.s32.totalorder %s125, %s127
      %p134 = scmp.eq.s32.totalorder %s19, 1
      %p135 = por %p133, %p134
      %p136 = scmp.ne.s32.totalorder %s127, %s128
      %p137 = scmp.eq.s32.totalorder %s19, 0
      %p138 = por %p136, %p137
      %p139 = scmp.ne.s32.totalorder %s127, %s128
      %p140 = scmp.eq.s32.totalorder %s20, 1
      %p141 = por %p139, %p140
      %p143 = scmp.ne.s32.totalorder %s128, %s142
      %p144 = scmp.eq.s32.totalorder %s20, 0
      %p145 = por %p143, %p144
      %s147 = sadd.s32 %s146, 1
      %p150 = scmp.eq.s32.totalorder %s14, 1
      %p151 = scmp.ne.s32.totalorder %s146, %s148
      %p152 = scmp.eq.s32.totalorder %s14, 0
      %p153 = por %p151, %p152
      %p154 = scmp.ne.s32.totalorder %s146, %s148
      %p155 = scmp.eq.s32.totalorder %s19, 1
      %p156 = por %p154, %p155
      %p157 = scmp.ne.s32.totalorder %s148, %s149
      %p158 = scmp.eq.s32.totalorder %s19, 0
      %p159 = por %p157, %p158
      %p160 = scmp.ne.s32.totalorder %s148, %s149
      %p161 = scmp.eq.s32.totalorder %s20, 1
      %p162 = por %p160, %p161
      %p164 = scmp.ne.s32.totalorder %s149, %s163
      %p165 = scmp.eq.s32.totalorder %s20, 0
      %p166 = por %p164, %p165
      %s167 = ssub.s32 %s21, %s40
      %s168 = ssub.s32 %s22, %s36
      %s169 = sor.u32 %s167, %s168
      %p170 = scmp.eq.s32.totalorder %s169, 0
      %s172 = sadd.s32 %s171, 1
      %s173 = scalar_select %p170, %s171, %s172
      %p176 = pneg %p170
      %p177 = scmp.eq.s32.totalorder %s14, 1
      %p178 = por %p176, %p177
      %p179 = scmp.ne.s32.totalorder %s171, %s174
      %p180 = scmp.eq.s32.totalorder %s14, 0
      %p181 = por %p179, %p180
      %p182 = scmp.ne.s32.totalorder %s171, %s174
      %p183 = scmp.eq.s32.totalorder %s19, 1
      %p184 = por %p182, %p183
      %p185 = scmp.ne.s32.totalorder %s174, %s175
      %p186 = scmp.eq.s32.totalorder %s19, 0
      %p187 = por %p185, %p186
      %p188 = scmp.ne.s32.totalorder %s174, %s175
      %p189 = scmp.eq.s32.totalorder %s20, 1
      %p190 = por %p188, %p189
      %p192 = scmp.ne.s32.totalorder %s175, %s191
      %p193 = scmp.eq.s32.totalorder %s20, 0
      %p194 = por %p192, %p193
      %p195 = scmp.le.s32.totalorder 1, %s14
      %p196 = scmp.lt.s32.totalorder %s14, 3
      %p197 = pnand %p195, %p196
      %p198 = pneg %p197
      // Predicated region
      $region9: #{multi_head_attention.3} parent=5 // pred_check
        _
      $region10: #{multi_head_attention.3} parent=5 // pred_check_branch
        %200 = sbr.rel (%p197) target = $region12
      $region11: #{multi_head_attention.3} parent=5 // pred_region
        %s201 = ssub.s32 %s14, 1
        // Predicated region
        $region13: #{multi_head_attention.3} parent=11 // pred_check
          %p202 = pneg %p138
        $region14: #{multi_head_attention.3} parent=11 // pred_check_branch
          %204 = sbr.rel (%p202) target = $region16
        $region15: #{multi_head_attention.3} parent=11 // pred_region
          _
        $region16: #{multi_head_attention.3} parent=11 // pred_fallthru
          _
        // Predicated region
        $region17: #{multi_head_attention.3} parent=11 // pred_check
          %p205 = pneg %p159
        $region18: #{multi_head_attention.3} parent=11 // pred_check_branch
          %207 = sbr.rel (%p205) target = $region20
        $region19: #{multi_head_attention.3} parent=11 // pred_region
          _
        $region20: #{multi_head_attention.3} parent=11 // pred_fallthru
          _
      $region12: #{multi_head_attention.3} parent=5 // pred_fallthru
        _
      %p208 = scmp.lt.s32.totalorder %s14, 2
      // Predicated region
      $region21: #{multi_head_attention.3} parent=5 // pred_check
        %p209 = pneg %p208
      $region22: #{multi_head_attention.3} parent=5 // pred_check_branch
        %211 = sbr.rel (%p209) target = $region24
      $region23: #{multi_head_attention.3} parent=5 // pred_region
        // Predicated region
        $region25: #{multi_head_attention.3} parent=23 // pred_check
          %p212 = pneg %p55
        $region26: #{multi_head_attention.3} parent=23 // pred_check_branch
          %214 = sbr.rel (%p212) target = $region28
        $region27: #{multi_head_attention.3} parent=23 // pred_region
          %p215 = scmp.lt.s32.totalorder %s21, 1
          %s216 = scalar_select %p215, %s21, 1
          %p217 = scmp.lt.s32.totalorder %s22, 0
          %s218 = scalar_select %p217, %s22, 0
          %s219 = sadd.s32 %s218, %s216
          %s220 = smul.addr %s219, 4
          %s221 = scalar_lea.vmem %s0, %s220
        $region28: #{multi_head_attention.3} parent=23 // pred_fallthru
          _
        // Predicated region
        $region29: #{multi_head_attention.3} parent=23 // pred_check
          %p222 = pneg %p83
        $region30: #{multi_head_attention.3} parent=23 // pred_check_branch
          %224 = sbr.rel (%p222) target = $region32
        $region31: #{multi_head_attention.3} parent=23 // pred_region
          %p225 = scmp.lt.s32.totalorder %s21, 1
          %s226 = scalar_select %p225, %s21, 1
          %p227 = scmp.lt.s32.totalorder %s23, 0
          %s228 = scalar_select %p227, %s23, 0
          %s229 = sadd.s32 %s228, %s226
          %s230 = smul.addr %s229, 4
          %s231 = scalar_lea.vmem %s1, %s230
        $region32: #{multi_head_attention.3} parent=23 // pred_fallthru
          _
        // Predicated region
        $region33: #{multi_head_attention.3} parent=23 // pred_check
          %p232 = pneg %p111
        $region34: #{multi_head_attention.3} parent=23 // pred_check_branch
          %234 = sbr.rel (%p232) target = $region36
        $region35: #{multi_head_attention.3} parent=23 // pred_region
          %p235 = scmp.lt.s32.totalorder %s21, 1
          %s236 = scalar_select %p235, %s21, 1
          %p237 = scmp.lt.s32.totalorder %s23, 0
          %s238 = scalar_select %p237, %s23, 0
          %s239 = sadd.s32 %s238, %s236
          %s240 = smul.addr %s239, 4
          %s241 = scalar_lea.vmem %s2, %s240
        $region36: #{multi_head_attention.3} parent=23 // pred_fallthru
          _
      $region24: #{multi_head_attention.3} parent=5 // pred_fallthru
        _
      %p242 = scmp.le.s32.totalorder 1, %s14
      %p243 = scmp.lt.s32.totalorder %s14, 3
      %p244 = pnand %p242, %p243
      %p245 = pneg %p244
      // Predicated region
      $region37: #{multi_head_attention.3} parent=5 // pred_check
        _
      $region38: #{multi_head_attention.3} parent=5 // pred_check_branch
        %247 = sbr.rel (%p244) target = $region40
      $region39: #{multi_head_attention.3} parent=5 // pred_region
        %s248 = ssub.s32 %s14, 1
        %p249 = scmp.lt.s32.totalorder %s24, 1
        %s250 = scalar_select %p249, %s24, 1
        %p251 = scmp.lt.s32.totalorder %s25, 0
        %s252 = scalar_select %p251, %s25, 0
        %s253 = sadd.s32 %s252, %s250
        %s254 = smul.addr %s253, 4
        %s255 = scalar_lea.vmem %s0, %s254
        %p256 = pneg %p61
        %p257 = pneg %p58
        %p258 = scmp.lt.s32.totalorder %s24, 1
        %s259 = scalar_select %p258, %s24, 1
        %p260 = scmp.lt.s32.totalorder %s26, 0
        %s261 = scalar_select %p260, %s26, 0
        %s262 = sadd.s32 %s261, %s259
        %s263 = smul.addr %s262, 4
        %s264 = scalar_lea.vmem %s1, %s263
        %p265 = pneg %p89
        %p266 = pneg %p86
        %p267 = scmp.lt.s32.totalorder %s24, 1
        %s268 = scalar_select %p267, %s24, 1
        %p269 = scmp.lt.s32.totalorder %s26, 0
        %s270 = scalar_select %p269, %s26, 0
        %s271 = sadd.s32 %s270, %s268
        %s272 = smul.addr %s271, 4
        %s273 = scalar_lea.vmem %s2, %s272
        %p274 = pneg %p117
        %p275 = pneg %p114
        %p276 = pneg %p138
        %p277 = pneg %p135
        %p278 = pneg %p159
        %p279 = pneg %p156
        %p280 = pneg %p187
        %p281 = pneg %p184
        %s282 = sand.u32 %s174, 1
        %s283 = scalar_lea.sflag [#allocation6], %s282
        %s284 = sand.u32 %s174, 1
        %s285 = smul.addr %s284, 8
        %s286 = scalar_lea.vmem [#allocation5], %s285
        %p287 = scmp.lt.s32.totalorder %s24, 1
        %s288 = scalar_select %p287, %s24, 1
        %p289 = scmp.lt.s32.totalorder %s25, 0
        %s290 = scalar_select %p289, %s25, 0
        %s291 = sadd.s32 %s290, %s288
        %s292 = smul.addr %s291, 4
        %s293 = scalar_lea.vmem %s0, %s292
        %p294 = scmp.lt.s32.totalorder %s24, 1
        %s295 = scalar_select %p294, %s24, 1
        %p296 = scmp.lt.s32.totalorder %s26, 0
        %s297 = scalar_select %p296, %s26, 0
        %s298 = sadd.s32 %s297, %s295
        %s299 = smul.addr %s298, 4
        %s300 = scalar_lea.vmem %s1, %s299
        %p301 = scmp.lt.s32.totalorder %s24, 1
        %s302 = scalar_select %p301, %s24, 1
        %p303 = scmp.lt.s32.totalorder %s26, 0
        %s304 = scalar_select %p303, %s26, 0
        %s305 = sadd.s32 %s304, %s302
        %s306 = smul.addr %s305, 4
        %s307 = scalar_lea.vmem %s2, %s306
        %p309 = scmp.eq.s32.totalorder %s26, 0
        // Predicated region
        $region41: #{multi_head_attention.3} parent=39 // pred_check
          %p310 = pneg %p309
        $region42: #{multi_head_attention.3} parent=39 // pred_check_branch
          %312 = sbr.rel (%p310) target = $region44
        $region43: #{multi_head_attention.3} parent=39 // pred_region
          %vm313 = vcmask 7168
          %314 = vst.msk [vmem:[#allocation2] sm:$0xff] %vm313, -1e+30
          %315 = vst.msk [vmem:[#allocation2 + $0x8] sm:$0xff] %vm313, -1e+30
          %316 = vst.msk [vmem:[#allocation2 + $0x10] sm:$0xff] %vm313, -1e+30
          %317 = vst.msk [vmem:[#allocation2 + $0x18] sm:$0xff] %vm313, -1e+30
          %318 = vst.msk [vmem:[#allocation3] sm:$0xff] %vm313, 0.0
          %319 = vst.msk [vmem:[#allocation3 + $0x8] sm:$0xff] %vm313, 0.0
          %320 = vst.msk [vmem:[#allocation3 + $0x10] sm:$0xff] %vm313, 0.0
          %321 = vst.msk [vmem:[#allocation3 + $0x18] sm:$0xff] %vm313, 0.0
          %vm322 = vcmask 64512
          %323 = vst.msk [vmem:[#allocation4] sm:$0xff] %vm322, 0.0
          %324 = vst.msk [vmem:[#allocation4 + $0x8] sm:$0xff] %vm322, 0.0
          %325 = vst.msk [vmem:[#allocation4 + $0x10] sm:$0xff] %vm322, 0.0
          %326 = vst.msk [vmem:[#allocation4 + $0x18] sm:$0xff] %vm322, 0.0
        $region44: #{multi_head_attention.3} parent=39 // pred_fallthru
          _
        %s327 = smul.u32 %s26, 8
        %s328 = smul.u32 %s25, 8
        %s329 = sadd.s32 %s328, 7
        %p330 = scmp.le.s32.totalorder %s327, %s329
        // Predicated region
        $region45: #{multi_head_attention.3} parent=39 // pred_check
          %p331 = pneg %p330
        $region46: #{multi_head_attention.3} parent=39 // pred_check_branch
          %333 = sbr.rel (%p331) target = $region48
        $region47: #{multi_head_attention.3} parent=39 // pred_region
          %v334 = vld [vmem:[%s293] sm:$0xf]
          %v335 = vld [vmem:[%s300] sm:$0xf]
          %v336 = vld [vmem:[%s307] sm:$0xf]
          %v337 = vlaneseq
          %v338 = vshrl.u32 %v337, 7
          %v339 = vstv %s328
          %v340 = vadd.s32 %v339, %v338
          %v341 = vlaneseq
          %v342 = vand.u32 %v341, 127
          %v343 = vstv %s327
          %v344 = vadd.s32 %v343, %v342
          %vm345 = vcmp.le.s32.totalorder %v344, %v340
          %vm346 = vcmask 64512
          %v348 = vsel %vm346, %v334, 0
          %v351 = vsel %vm346, %v335, 0
          %353 = vmatprep.subr.bf16.mxu0 0
          %354 = vmatpush1.bf16.xpose.msra.mxu0 0
          %355 = vmatprep.subr.bf16.mxu0 0
          %356 = vmatpush1.bf16.xpose.msra.mxu0 0
          %357 = vmatprep.subr.bf16.mxu0 0
          %358 = vmatpush1.bf16.xpose.msra.mxu0 0
          %359 = vmatprep.subr.bf16.mxu0 0
          %360 = vmatpush1.bf16.xpose.msra.mxu0 0
          %361 = vmatprep.subr.bf16.mxu0 0
          %362 = vmatpush1.bf16.xpose.msra.mxu0 0
          %363 = vmatprep.subr.bf16.mxu0 0
          %364 = vmatpush1.bf16.xpose.msra.mxu0 0
          %365 = vmatprep.subr.bf16.mxu0 0
          %366 = vmatpush1.bf16.xpose.msra.mxu0 0
          %367 = vmatprep.subr.bf16.mxu0 0
          %368 = vmatpush1.bf16.xpose.msra.mxu0 %v351
          %369 = vmatprep.subr.bf16.mxu0 0
          %370 = vmatpush2.bf16.xpose.msra.mxu0 0
          %371 = vmatprep.subr.bf16.mxu0 0
          %372 = vmatpush2.bf16.xpose.msra.mxu0 0
          %373 = vmatprep.subr.bf16.mxu0 0
          %374 = vmatpush2.bf16.xpose.msra.mxu0 0
          %375 = vmatprep.subr.bf16.mxu0 0
          %376 = vmatpush2.bf16.xpose.msra.mxu0 0
          %377 = vmatprep.subr.bf16.mxu0 0
          %378 = vmatpush2.bf16.xpose.msra.mxu0 0
          %379 = vmatprep.subr.bf16.mxu0 0
          %380 = vmatpush2.bf16.xpose.msra.mxu0 0
          %381 = vmatprep.subr.bf16.mxu0 0
          %382 = vmatpush2.bf16.xpose.msra.mxu0 0
          %383 = vmatprep.subr.bf16.mxu0 0
          %384 = vmatpush2.bf16.xpose.msra.mxu0 0
          %385 = vmatprep.mubr.bf16.mxu0 0
          %386 = vmatmul.mubr.bf16.gmra.mxu0 %v348
          %v387 = vpop.f32.mrf.mxu0
          %v388 = vadd.f32 0.0, %v387
          %v389 = vpop.f32.mrf.mxu0
          %v390 = vpop.f32.mrf.mxu0
          %v391 = vpop.f32.mrf.mxu0
          %392 = vdwg.mxu0
          %v393 = vsel %vm345, %v388, -1e+30
          %v394 = vld [vmem:[#allocation2] sm:$0xff]
          %v395 = vsel %vm346, %v393, -inf
          %396 = vmax.xlane.f32.xlu0 %v395
          %v397 = vpop.xlane.xlu0 %396
          %v398 = vmax.f32 %v394, %v397
          %v399 = vsub.f32 %v394, %v398
          %v400 = vmul.f32 %v399, 1.442695
          %v401 = vpow.pop %v400
          %403 = vset.pattern.permute.xlu0 0
          %404 = vperm.xlu0 %403, %v398
          %v405 = vpop.permute.xlu0 %404
          %v407 = vsub.f32 %v393, %v405
          %v408 = vmul.f32 %v407, 1.442695
          %v409 = vpow.pop %v408
          %v410 = vld [vmem:[#allocation3] sm:$0xff]
          %v411 = vmul.f32 %v401, %v410
          %v412 = vsel %vm346, %v409, 0.0
          %413 = vadd.xlane.f32.xlu0 %v412
          %v414 = vpop.xlane.xlu0 %413
          %v415 = vadd.f32 %v411, %v414
          %vm416 = vcmask 7168
          %417 = vst.msk [vmem:[#allocation3] sm:$0xff] %vm416, %v415
          %v418 = vld [vmem:[#allocation4] sm:$0xff]
          %420 = vset.pattern.permute.xlu0 0
          %421 = vperm.xlu0 %420, %v401
          %v422 = vpop.permute.xlu0 %421
          %v424 = vmul.f32 %v422, %v418
          %v425 = vpack.c.bf16 %v409, %v409
          %v427 = vsel %vm346, %v425, 0
          %vm429 = vcmask 1043456
          %v431 = vsel %vm429, %v336, 0
          %433 = vmatprep.subr.bf16.mxu0 0
          %434 = vmatpush1.bf16.msra.mxu0 0
          %435 = vmatprep.subr.bf16.mxu0 0
          %436 = vmatpush1.bf16.msra.mxu0 0
          %437 = vmatprep.subr.bf16.mxu0 0
          %438 = vmatpush1.bf16.msra.mxu0 0
          %439 = vmatprep.subr.bf16.mxu0 0
          %440 = vmatpush1.bf16.msra.mxu0 0
          %441 = vmatprep.subr.bf16.mxu0 0
          %442 = vmatpush1.bf16.msra.mxu0 0
          %443 = vmatprep.subr.bf16.mxu0 0
          %444 = vmatpush1.bf16.msra.mxu0 0
          %445 = vmatprep.subr.bf16.mxu0 0
          %446 = vmatpush1.bf16.msra.mxu0 0
          %447 = vmatprep.subr.bf16.mxu0 0
          %448 = vmatpush1.bf16.msra.mxu0 %v431
          %449 = vmatprep.subr.bf16.mxu0 0
          %450 = vmatpush2.bf16.msra.mxu0 0
          %451 = vmatprep.subr.bf16.mxu0 0
          %452 = vmatpush2.bf16.msra.mxu0 0
          %453 = vmatprep.subr.bf16.mxu0 0
          %454 = vmatpush2.bf16.msra.mxu0 0
          %455 = vmatprep.subr.bf16.mxu0 0
          %456 = vmatpush2.bf16.msra.mxu0 0
          %457 = vmatprep.subr.bf16.mxu0 0
          %458 = vmatpush2.bf16.msra.mxu0 0
          %459 = vmatprep.subr.bf16.mxu0 0
          %460 = vmatpush2.bf16.msra.mxu0 0
          %461 = vmatprep.subr.bf16.mxu0 0
          %462 = vmatpush2.bf16.msra.mxu0 0
          %463 = vmatprep.subr.bf16.mxu0 0
          %464 = vmatpush2.bf16.msra.mxu0 0
          %465 = vmatprep.mubr.bf16.mxu0 0
          %466 = vmatmul.mubr.bf16.gmra.mxu0 %v427
          %v467 = vpop.f32.mrf.mxu0
          %v468 = vadd.f32 0.0, %v467
          %v469 = vpop.f32.mrf.mxu0
          %v470 = vpop.f32.mrf.mxu0
          %v471 = vpop.f32.mrf.mxu0
          %472 = vdwg.mxu0
          %v473 = vadd.f32 %v424, %v468
          %474 = vst.msk [vmem:[#allocation4] sm:$0xff] %vm346, %v473
          %475 = vst.msk [vmem:[#allocation2] sm:$0xff] %vm416, %v398
          %v477 = vunpack.c.l.b16 %v334
          %v478 = vpack.c.b16 %v477, %v477
          %479 = vrot.lane.b32.xlu0 %v478, 120
          %v480 = vpop.permute.xlu0 %479
          %v482 = vunpack.c.l.b16 %v335
          %v483 = vpack.c.b16 %v482, %v482
          %484 = vrot.lane.b32.xlu0 %v483, 120
          %v485 = vpop.permute.xlu0 %484
          %v487 = vsel %vm346, %v480, 0
          %v490 = vsel %vm346, %v485, 0
          %492 = vmatprep.subr.bf16.mxu0 0
          %493 = vmatpush1.bf16.xpose.msra.mxu0 0
          %494 = vmatprep.subr.bf16.mxu0 0
          %495 = vmatpush1.bf16.xpose.msra.mxu0 0
          %496 = vmatprep.subr.bf16.mxu0 0
          %497 = vmatpush1.bf16.xpose.msra.mxu0 0
          %498 = vmatprep.subr.bf16.mxu0 0
          %499 = vmatpush1.bf16.xpose.msra.mxu0 0
          %500 = vmatprep.subr.bf16.mxu0 0
          %501 = vmatpush1.bf16.xpose.msra.mxu0 0
          %502 = vmatprep.subr.bf16.mxu0 0
          %503 = vmatpush1.bf16.xpose.msra.mxu0 0
          %504 = vmatprep.subr.bf16.mxu0 0
          %505 = vmatpush1.bf16.xpose.msra.mxu0 0
          %506 = vmatprep.subr.bf16.mxu0 0
          %507 = vmatpush1.bf16.xpose.msra.mxu0 %v490
          %508 = vmatprep.subr.bf16.mxu0 0
          %509 = vmatpush2.bf16.xpose.msra.mxu0 0
          %510 = vmatprep.subr.bf16.mxu0 0
          %511 = vmatpush2.bf16.xpose.msra.mxu0 0
          %512 = vmatprep.subr.bf16.mxu0 0
          %513 = vmatpush2.bf16.xpose.msra.mxu0 0
          %514 = vmatprep.subr.bf16.mxu0 0
          %515 = vmatpush2.bf16.xpose.msra.mxu0 0
          %516 = vmatprep.subr.bf16.mxu0 0
          %517 = vmatpush2.bf16.xpose.msra.mxu0 0
          %518 = vmatprep.subr.bf16.mxu0 0
          %519 = vmatpush2.bf16.xpose.msra.mxu0 0
          %520 = vmatprep.subr.bf16.mxu0 0
          %521 = vmatpush2.bf16.xpose.msra.mxu0 0
          %522 = vmatprep.subr.bf16.mxu0 0
          %523 = vmatpush2.bf16.xpose.msra.mxu0 0
          %524 = vmatprep.mubr.bf16.mxu0 0
          %525 = vmatmul.mubr.bf16.gmra.mxu0 %v487
          %v526 = vpop.f32.mrf.mxu0
          %v527 = vadd.f32 0.0, %v526
          %v528 = vpop.f32.mrf.mxu0
          %v529 = vpop.f32.mrf.mxu0
          %v530 = vpop.f32.mrf.mxu0
          %531 = vdwg.mxu0
          %v532 = vsel %vm345, %v527, -1e+30
          %s533 = scalar_lea.vmem [#allocation2], 8
          %v534 = vld [vmem:[%s533] sm:$0xff]
          %v535 = vsel %vm346, %v532, -inf
          %536 = vmax.xlane.f32.xlu0 %v535
          %v537 = vpop.xlane.xlu0 %536
          %v538 = vmax.f32 %v534, %v537
          %v539 = vsub.f32 %v534, %v538
          %v540 = vmul.f32 %v539, 1.442695
          %v541 = vpow.pop %v540
          %543 = vset.pattern.permute.xlu0 0
          %544 = vperm.xlu0 %543, %v538
          %v545 = vpop.permute.xlu0 %544
          %v547 = vsub.f32 %v532, %v545
          %v548 = vmul.f32 %v547, 1.442695
          %v549 = vpow.pop %v548
          %s550 = scalar_lea.vmem [#allocation3], 8
          %v551 = vld [vmem:[%s550] sm:$0xff]
          %v552 = vmul.f32 %v541, %v551
          %v553 = vsel %vm346, %v549, 0.0
          %554 = vadd.xlane.f32.xlu0 %v553
          %v555 = vpop.xlane.xlu0 %554
          %v556 = vadd.f32 %v552, %v555
          %557 = vst.msk [vmem:[%s550] sm:$0xff] %vm416, %v556
          %s558 = scalar_lea.vmem [#allocation4], 8
          %v559 = vld [vmem:[%s558] sm:$0xff]
          %561 = vset.pattern.permute.xlu0 0
          %562 = vperm.xlu0 %561, %v541
          %v563 = vpop.permute.xlu0 %562
          %v565 = vmul.f32 %v563, %v559
          %v566 = vpack.c.bf16 %v549, %v549
          %v568 = vunpack.c.l.b16 %v336
          %v569 = vpack.c.b16 %v568, %v568
          %570 = vrot.lane.b32.xlu0 %v569, 120
          %v571 = vpop.permute.xlu0 %570
          %v573 = vsel %vm346, %v566, 0
          %v576 = vsel %vm429, %v571, 0
          %578 = vmatprep.subr.bf16.mxu0 0
          %579 = vmatpush1.bf16.msra.mxu0 0
          %580 = vmatprep.subr.bf16.mxu0 0
          %581 = vmatpush1.bf16.msra.mxu0 0
          %582 = vmatprep.subr.bf16.mxu0 0
          %583 = vmatpush1.bf16.msra.mxu0 0
          %584 = vmatprep.subr.bf16.mxu0 0
          %585 = vmatpush1.bf16.msra.mxu0 0
          %586 = vmatprep.subr.bf16.mxu0 0
          %587 = vmatpush1.bf16.msra.mxu0 0
          %588 = vmatprep.subr.bf16.mxu0 0
          %589 = vmatpush1.bf16.msra.mxu0 0
          %590 = vmatprep.subr.bf16.mxu0 0
          %591 = vmatpush1.bf16.msra.mxu0 0
          %592 = vmatprep.subr.bf16.mxu0 0
          %593 = vmatpush1.bf16.msra.mxu0 %v576
          %594 = vmatprep.subr.bf16.mxu0 0
          %595 = vmatpush2.bf16.msra.mxu0 0
          %596 = vmatprep.subr.bf16.mxu0 0
          %597 = vmatpush2.bf16.msra.mxu0 0
          %598 = vmatprep.subr.bf16.mxu0 0
          %599 = vmatpush2.bf16.msra.mxu0 0
          %600 = vmatprep.subr.bf16.mxu0 0
          %601 = vmatpush2.bf16.msra.mxu0 0
          %602 = vmatprep.subr.bf16.mxu0 0
          %603 = vmatpush2.bf16.msra.mxu0 0
          %604 = vmatprep.subr.bf16.mxu0 0
          %605 = vmatpush2.bf16.msra.mxu0 0
          %606 = vmatprep.subr.bf16.mxu0 0
          %607 = vmatpush2.bf16.msra.mxu0 0
          %608 = vmatprep.subr.bf16.mxu0 0
          %609 = vmatpush2.bf16.msra.mxu0 0
          %610 = vmatprep.mubr.bf16.mxu0 0
          %611 = vmatmul.mubr.bf16.gmra.mxu0 %v573
          %v612 = vpop.f32.mrf.mxu0
          %v613 = vadd.f32 0.0, %v612
          %v614 = vpop.f32.mrf.mxu0
          %v615 = vpop.f32.mrf.mxu0
          %v616 = vpop.f32.mrf.mxu0
          %617 = vdwg.mxu0
          %v618 = vadd.f32 %v565, %v613
          %619 = vst.msk [vmem:[%s558] sm:$0xff] %vm346, %v618
          %620 = vst.msk [vmem:[%s533] sm:$0xff] %vm416, %v538
          %621 = vrot.lane.b32.xlu0 %v478, 112
          %v622 = vpop.permute.xlu0 %621
          %623 = vrot.lane.b32.xlu0 %v483, 112
          %v624 = vpop.permute.xlu0 %623
          %v626 = vsel %vm346, %v622, 0
          %v629 = vsel %vm346, %v624, 0
          %631 = vmatprep.subr.bf16.mxu0 0
          %632 = vmatpush1.bf16.xpose.msra.mxu0 0
          %633 = vmatprep.subr.bf16.mxu0 0
          %634 = vmatpush1.bf16.xpose.msra.mxu0 0
          %635 = vmatprep.subr.bf16.mxu0 0
          %636 = vmatpush1.bf16.xpose.msra.mxu0 0
          %637 = vmatprep.subr.bf16.mxu0 0
          %638 = vmatpush1.bf16.xpose.msra.mxu0 0
          %639 = vmatprep.subr.bf16.mxu0 0
          %640 = vmatpush1.bf16.xpose.msra.mxu0 0
          %641 = vmatprep.subr.bf16.mxu0 0
          %642 = vmatpush1.bf16.xpose.msra.mxu0 0
          %643 = vmatprep.subr.bf16.mxu0 0
          %644 = vmatpush1.bf16.xpose.msra.mxu0 0
          %645 = vmatprep.subr.bf16.mxu0 0
          %646 = vmatpush1.bf16.xpose.msra.mxu0 %v629
          %647 = vmatprep.subr.bf16.mxu0 0
          %648 = vmatpush2.bf16.xpose.msra.mxu0 0
          %649 = vmatprep.subr.bf16.mxu0 0
          %650 = vmatpush2.bf16.xpose.msra.mxu0 0
          %651 = vmatprep.subr.bf16.mxu0 0
          %652 = vmatpush2.bf16.xpose.msra.mxu0 0
          %653 = vmatprep.subr.bf16.mxu0 0
          %654 = vmatpush2.bf16.xpose.msra.mxu0 0
          %655 = vmatprep.subr.bf16.mxu0 0
          %656 = vmatpush2.bf16.xpose.msra.mxu0 0
          %657 = vmatprep.subr.bf16.mxu0 0
          %658 = vmatpush2.bf16.xpose.msra.mxu0 0
          %659 = vmatprep.subr.bf16.mxu0 0
          %660 = vmatpush2.bf16.xpose.msra.mxu0 0
          %661 = vmatprep.subr.bf16.mxu0 0
          %662 = vmatpush2.bf16.xpose.msra.mxu0 0
          %663 = vmatprep.mubr.bf16.mxu0 0
          %664 = vmatmul.mubr.bf16.gmra.mxu0 %v626
          %v665 = vpop.f32.mrf.mxu0
          %v666 = vadd.f32 0.0, %v665
          %v667 = vpop.f32.mrf.mxu0
          %v668 = vpop.f32.mrf.mxu0
          %v669 = vpop.f32.mrf.mxu0
          %670 = vdwg.mxu0
          %v671 = vsel %vm345, %v666, -1e+30
          %s672 = scalar_lea.vmem [#allocation2], 16
          %v673 = vld [vmem:[%s672] sm:$0xff]
          %v674 = vsel %vm346, %v671, -inf
          %675 = vmax.xlane.f32.xlu0 %v674
          %v676 = vpop.xlane.xlu0 %675
          %v677 = vmax.f32 %v673, %v676
          %v678 = vsub.f32 %v673, %v677
          %v679 = vmul.f32 %v678, 1.442695
          %v680 = vpow.pop %v679
          %682 = vset.pattern.permute.xlu0 0
          %683 = vperm.xlu0 %682, %v677
          %v684 = vpop.permute.xlu0 %683
          %v686 = vsub.f32 %v671, %v684
          %v687 = vmul.f32 %v686, 1.442695
          %v688 = vpow.pop %v687
          %s689 = scalar_lea.vmem [#allocation3], 16
          %v690 = vld [vmem:[%s689] sm:$0xff]
          %v691 = vmul.f32 %v680, %v690
          %v692 = vsel %vm346, %v688, 0.0
          %693 = vadd.xlane.f32.xlu0 %v692
          %v694 = vpop.xlane.xlu0 %693
          %v695 = vadd.f32 %v691, %v694
          %696 = vst.msk [vmem:[%s689] sm:$0xff] %vm416, %v695
          %s697 = scalar_lea.vmem [#allocation4], 16
          %v698 = vld [vmem:[%s697] sm:$0xff]
          %700 = vset.pattern.permute.xlu0 0
          %701 = vperm.xlu0 %700, %v680
          %v702 = vpop.permute.xlu0 %701
          %v704 = vmul.f32 %v702, %v698
          %v705 = vpack.c.bf16 %v688, %v688
          %706 = vrot.lane.b32.xlu0 %v569, 112
          %v707 = vpop.permute.xlu0 %706
          %v709 = vsel %vm346, %v705, 0
          %v712 = vsel %vm429, %v707, 0
          %714 = vmatprep.subr.bf16.mxu0 0
          %715 = vmatpush1.bf16.msra.mxu0 0
          %716 = vmatprep.subr.bf16.mxu0 0
          %717 = vmatpush1.bf16.msra.mxu0 0
          %718 = vmatprep.subr.bf16.mxu0 0
          %719 = vmatpush1.bf16.msra.mxu0 0
          %720 = vmatprep.subr.bf16.mxu0 0
          %721 = vmatpush1.bf16.msra.mxu0 0
          %722 = vmatprep.subr.bf16.mxu0 0
          %723 = vmatpush1.bf16.msra.mxu0 0
          %724 = vmatprep.subr.bf16.mxu0 0
          %725 = vmatpush1.bf16.msra.mxu0 0
          %726 = vmatprep.subr.bf16.mxu0 0
          %727 = vmatpush1.bf16.msra.mxu0 0
          %728 = vmatprep.subr.bf16.mxu0 0
          %729 = vmatpush1.bf16.msra.mxu0 %v712
          %730 = vmatprep.subr.bf16.mxu0 0
          %731 = vmatpush2.bf16.msra.mxu0 0
          %732 = vmatprep.subr.bf16.mxu0 0
          %733 = vmatpush2.bf16.msra.mxu0 0
          %734 = vmatprep.subr.bf16.mxu0 0
          %735 = vmatpush2.bf16.msra.mxu0 0
          %736 = vmatprep.subr.bf16.mxu0 0
          %737 = vmatpush2.bf16.msra.mxu0 0
          %738 = vmatprep.subr.bf16.mxu0 0
          %739 = vmatpush2.bf16.msra.mxu0 0
          %740 = vmatprep.subr.bf16.mxu0 0
          %741 = vmatpush2.bf16.msra.mxu0 0
          %742 = vmatprep.subr.bf16.mxu0 0
          %743 = vmatpush2.bf16.msra.mxu0 0
          %744 = vmatprep.subr.bf16.mxu0 0
          %745 = vmatpush2.bf16.msra.mxu0 0
          %746 = vmatprep.mubr.bf16.mxu0 0
          %747 = vmatmul.mubr.bf16.gmra.mxu0 %v709
          %v748 = vpop.f32.mrf.mxu0
          %v749 = vadd.f32 0.0, %v748
          %v750 = vpop.f32.mrf.mxu0
          %v751 = vpop.f32.mrf.mxu0
          %v752 = vpop.f32.mrf.mxu0
          %753 = vdwg.mxu0
          %v754 = vadd.f32 %v704, %v749
          %755 = vst.msk [vmem:[%s697] sm:$0xff] %vm346, %v754
          %756 = vst.msk [vmem:[%s672] sm:$0xff] %vm416, %v677
          %757 = vrot.lane.b32.xlu0 %v478, 104
          %v758 = vpop.permute.xlu0 %757
          %759 = vrot.lane.b32.xlu0 %v483, 104
          %v760 = vpop.permute.xlu0 %759
          %v762 = vsel %vm346, %v758, 0
          %v765 = vsel %vm346, %v760, 0
          %767 = vmatprep.subr.bf16.mxu0 0
          %768 = vmatpush1.bf16.xpose.msra.mxu0 0
          %769 = vmatprep.subr.bf16.mxu0 0
          %770 = vmatpush1.bf16.xpose.msra.mxu0 0
          %771 = vmatprep.subr.bf16.mxu0 0
          %772 = vmatpush1.bf16.xpose.msra.mxu0 0
          %773 = vmatprep.subr.bf16.mxu0 0
          %774 = vmatpush1.bf16.xpose.msra.mxu0 0
          %775 = vmatprep.subr.bf16.mxu0 0
          %776 = vmatpush1.bf16.xpose.msra.mxu0 0
          %777 = vmatprep.subr.bf16.mxu0 0
          %778 = vmatpush1.bf16.xpose.msra.mxu0 0
          %779 = vmatprep.subr.bf16.mxu0 0
          %780 = vmatpush1.bf16.xpose.msra.mxu0 0
          %781 = vmatprep.subr.bf16.mxu0 0
          %782 = vmatpush1.bf16.xpose.msra.mxu0 %v765
          %783 = vmatprep.subr.bf16.mxu0 0
          %784 = vmatpush2.bf16.xpose.msra.mxu0 0
          %785 = vmatprep.subr.bf16.mxu0 0
          %786 = vmatpush2.bf16.xpose.msra.mxu0 0
          %787 = vmatprep.subr.bf16.mxu0 0
          %788 = vmatpush2.bf16.xpose.msra.mxu0 0
          %789 = vmatprep.subr.bf16.mxu0 0
          %790 = vmatpush2.bf16.xpose.msra.mxu0 0
          %791 = vmatprep.subr.bf16.mxu0 0
          %792 = vmatpush2.bf16.xpose.msra.mxu0 0
          %793 = vmatprep.subr.bf16.mxu0 0
          %794 = vmatpush2.bf16.xpose.msra.mxu0 0
          %795 = vmatprep.subr.bf16.mxu0 0
          %796 = vmatpush2.bf16.xpose.msra.mxu0 0
          %797 = vmatprep.subr.bf16.mxu0 0
          %798 = vmatpush2.bf16.xpose.msra.mxu0 0
          %799 = vmatprep.mubr.bf16.mxu0 0
          %800 = vmatmul.mubr.bf16.gmra.mxu0 %v762
          %v801 = vpop.f32.mrf.mxu0
          %v802 = vadd.f32 0.0, %v801
          %v803 = vpop.f32.mrf.mxu0
          %v804 = vpop.f32.mrf.mxu0
          %v805 = vpop.f32.mrf.mxu0
          %806 = vdwg.mxu0
          %v807 = vsel %vm345, %v802, -1e+30
          %s808 = scalar_lea.vmem [#allocation2], 24
          %v809 = vld [vmem:[%s808] sm:$0xff]
          %v810 = vsel %vm346, %v807, -inf
          %811 = vmax.xlane.f32.xlu0 %v810
          %v812 = vpop.xlane.xlu0 %811
          %v813 = vmax.f32 %v809, %v812
          %v814 = vsub.f32 %v809, %v813
          %v815 = vmul.f32 %v814, 1.442695
          %v816 = vpow.pop %v815
          %818 = vset.pattern.permute.xlu0 0
          %819 = vperm.xlu0 %818, %v813
          %v820 = vpop.permute.xlu0 %819
          %v822 = vsub.f32 %v807, %v820
          %v823 = vmul.f32 %v822, 1.442695
          %v824 = vpow.pop %v823
          %s825 = scalar_lea.vmem [#allocation3], 24
          %v826 = vld [vmem:[%s825] sm:$0xff]
          %v827 = vmul.f32 %v816, %v826
          %v828 = vsel %vm346, %v824, 0.0
          %829 = vadd.xlane.f32.xlu0 %v828
          %v830 = vpop.xlane.xlu0 %829
          %v831 = vadd.f32 %v827, %v830
          %832 = vst.msk [vmem:[%s825] sm:$0xff] %vm416, %v831
          %s833 = scalar_lea.vmem [#allocation4], 24
          %v834 = vld [vmem:[%s833] sm:$0xff]
          %836 = vset.pattern.permute.xlu0 0
          %837 = vperm.xlu0 %836, %v816
          %v838 = vpop.permute.xlu0 %837
          %v840 = vmul.f32 %v838, %v834
          %v841 = vpack.c.bf16 %v824, %v824
          %842 = vrot.lane.b32.xlu0 %v569, 104
          %v843 = vpop.permute.xlu0 %842
          %v845 = vsel %vm346, %v841, 0
          %v848 = vsel %vm429, %v843, 0
          %850 = vmatprep.subr.bf16.mxu0 0
          %851 = vmatpush1.bf16.msra.mxu0 0
          %852 = vmatprep.subr.bf16.mxu0 0
          %853 = vmatpush1.bf16.msra.mxu0 0
          %854 = vmatprep.subr.bf16.mxu0 0
          %855 = vmatpush1.bf16.msra.mxu0 0
          %856 = vmatprep.subr.bf16.mxu0 0
          %857 = vmatpush1.bf16.msra.mxu0 0
          %858 = vmatprep.subr.bf16.mxu0 0
          %859 = vmatpush1.bf16.msra.mxu0 0
          %860 = vmatprep.subr.bf16.mxu0 0
          %861 = vmatpush1.bf16.msra.mxu0 0
          %862 = vmatprep.subr.bf16.mxu0 0
          %863 = vmatpush1.bf16.msra.mxu0 0
          %864 = vmatprep.subr.bf16.mxu0 0
          %865 = vmatpush1.bf16.msra.mxu0 %v848
          %866 = vmatprep.subr.bf16.mxu0 0
          %867 = vmatpush2.bf16.msra.mxu0 0
          %868 = vmatprep.subr.bf16.mxu0 0
          %869 = vmatpush2.bf16.msra.mxu0 0
          %870 = vmatprep.subr.bf16.mxu0 0
          %871 = vmatpush2.bf16.msra.mxu0 0
          %872 = vmatprep.subr.bf16.mxu0 0
          %873 = vmatpush2.bf16.msra.mxu0 0
          %874 = vmatprep.subr.bf16.mxu0 0
          %875 = vmatpush2.bf16.msra.mxu0 0
          %876 = vmatprep.subr.bf16.mxu0 0
          %877 = vmatpush2.bf16.msra.mxu0 0
          %878 = vmatprep.subr.bf16.mxu0 0
          %879 = vmatpush2.bf16.msra.mxu0 0
          %880 = vmatprep.subr.bf16.mxu0 0
          %881 = vmatpush2.bf16.msra.mxu0 0
          %882 = vmatprep.mubr.bf16.mxu0 0
          %883 = vmatmul.mubr.bf16.gmra.mxu0 %v845
          %v884 = vpop.f32.mrf.mxu0
          %v885 = vadd.f32 0.0, %v884
          %v886 = vpop.f32.mrf.mxu0
          %v887 = vpop.f32.mrf.mxu0
          %v888 = vpop.f32.mrf.mxu0
          %889 = vdwg.mxu0
          %v890 = vadd.f32 %v840, %v885
          %891 = vst.msk [vmem:[%s833] sm:$0xff] %vm346, %v890
          %892 = vst.msk [vmem:[%s808] sm:$0xff] %vm416, %v813
        $region48: #{multi_head_attention.3} parent=39 // pred_fallthru
          _
        // Predicated region
        $region49: #{multi_head_attention.3} parent=39 // pred_check
          %p893 = pneg %p309
        $region50: #{multi_head_attention.3} parent=39 // pred_check_branch
          %895 = sbr.rel (%p893) target = $region52
        $region51: #{multi_head_attention.3} parent=39 // pred_region
          %v896 = vld [vmem:[#allocation3] sm:$0xff]
          %v897 = vrcp.pop %v896
          %v898 = vld [vmem:[#allocation4] sm:$0xff]
          %900 = vset.pattern.permute.xlu0 0
          %901 = vperm.xlu0 %900, %v897
          %v902 = vpop.permute.xlu0 %901
          %v904 = vmul.f32 %v898, %v902
          %s905 = scalar_lea.vmem [#allocation3], 8
          %v906 = vld [vmem:[%s905] sm:$0xff]
          %v907 = vrcp.pop %v906
          %s908 = scalar_lea.vmem [#allocation4], 8
          %v909 = vld [vmem:[%s908] sm:$0xff]
          %911 = vset.pattern.permute.xlu0 0
          %912 = vperm.xlu0 %911, %v907
          %v913 = vpop.permute.xlu0 %912
          %v915 = vmul.f32 %v909, %v913
          %s916 = scalar_lea.vmem [#allocation3], 16
          %v917 = vld [vmem:[%s916] sm:$0xff]
          %v918 = vrcp.pop %v917
          %s919 = scalar_lea.vmem [#allocation4], 16
          %v920 = vld [vmem:[%s919] sm:$0xff]
          %922 = vset.pattern.permute.xlu0 0
          %923 = vperm.xlu0 %922, %v918
          %v924 = vpop.permute.xlu0 %923
          %v926 = vmul.f32 %v920, %v924
          %s927 = scalar_lea.vmem [#allocation3], 24
          %v928 = vld [vmem:[%s927] sm:$0xff]
          %v929 = vrcp.pop %v928
          %s930 = scalar_lea.vmem [#allocation4], 24
          %v931 = vld [vmem:[%s930] sm:$0xff]
          %933 = vset.pattern.permute.xlu0 0
          %934 = vperm.xlu0 %933, %v929
          %v935 = vpop.permute.xlu0 %934
          %v937 = vmul.f32 %v931, %v935
          %939 = vrot.lane.b32.xlu0 %v915, 8
          %v940 = vpop.permute.xlu0 %939
          %943 = vrot.lane.b32.xlu0 %v926, 16
          %v944 = vpop.permute.xlu0 %943
          %947 = vrot.lane.b32.xlu0 %v937, 24
          %v948 = vpop.permute.xlu0 %947
          %vm950 = vcmask 64512
          %v951 = vsel %vm950, %v904, %v940
          %vm952 = vcmask 130048
          %v953 = vsel %vm952, %v951, %v944
          %vm954 = vcmask 195584
          %v955 = vsel %vm954, %v953, %v948
          %v956 = vpack.c.bf16 %v955, %v955
          %v957 = vld [vmem:[%s3] sm:$0xf]
          %v958 = vld [vmem:[%s3 + $0x4] sm:$0xf]
          %v959 = vld [vmem:[%s3 + $0x8] sm:$0xf]
          %v960 = vld [vmem:[%s3 + $0xc] sm:$0xf]
          %v961 = vld [vmem:[%s4] sm:$0x1]
          %v963 = vlaneseq
          %v964 = vshrl.u32 %v963, 7
          %v965 = vsub.s32 0, %v964
          %v966 = vrot.slane %v961, %v965
          %v972 = vunpack.c.l.b16 %v957
          %v973 = vunpack.c.l.b16 %v958
          %v974 = vunpack.c.l.b16 %v959
          %v975 = vunpack.c.l.b16 %v960
          %v976 = vpack.c.b16 %v973, %v972
          %v977 = vpack.c.b16 %v975, %v974
          %vm980 = vcmask 261120
          %v982 = vsel %vm980, %v956, 0
          %984 = vmatprep.subr.bf16.mxu0 0
          %985 = vmatpush1.bf16.msra.mxu0 0
          %986 = vmatprep.subr.bf16.mxu0 0
          %987 = vmatpush1.bf16.msra.mxu0 0
          %988 = vmatprep.subr.bf16.mxu0 0
          %989 = vmatpush1.bf16.msra.mxu0 0
          %990 = vmatprep.subr.bf16.mxu0 0
          %991 = vmatpush1.bf16.msra.mxu0 0
          %992 = vmatprep.subr.bf16.mxu0 0
          %993 = vmatpush1.bf16.msra.mxu0 0
          %994 = vmatprep.subr.bf16.mxu0 0
          %995 = vmatpush1.bf16.msra.mxu0 0
          %996 = vmatprep.subr.bf16.mxu0 0
          %997 = vmatpush1.bf16.msra.mxu0 %v977
          %998 = vmatprep.subr.bf16.mxu0 0
          %999 = vmatpush1.bf16.msra.mxu0 %v976
          %1000 = vmatprep.subr.bf16.mxu0 0
          %1001 = vmatpush2.bf16.msra.mxu0 0
          %1002 = vmatprep.subr.bf16.mxu0 0
          %1003 = vmatpush2.bf16.msra.mxu0 0
          %1004 = vmatprep.subr.bf16.mxu0 0
          %1005 = vmatpush2.bf16.msra.mxu0 0
          %1006 = vmatprep.subr.bf16.mxu0 0
          %1007 = vmatpush2.bf16.msra.mxu0 0
          %1008 = vmatprep.subr.bf16.mxu0 0
          %1009 = vmatpush2.bf16.msra.mxu0 0
          %1010 = vmatprep.subr.bf16.mxu0 0
          %1011 = vmatpush2.bf16.msra.mxu0 0
          %1012 = vmatprep.subr.bf16.mxu0 0
          %1013 = vmatpush2.bf16.msra.mxu0 0
          %1014 = vmatprep.subr.bf16.mxu0 0
          %1015 = vmatpush2.bf16.msra.mxu0 0
          %1016 = vmatprep.mubr.bf16.mxu0 0
          %1017 = vmatmul.mubr.bf16.gmra.mxu0 %v982
          %v1018 = vpop.f32.mrf.mxu0
          %v1019 = vadd.f32 %v966, %v1018
          %v1020 = vpop.f32.mrf.mxu0
          %v1021 = vpop.f32.mrf.mxu0
          %v1022 = vpop.f32.mrf.mxu0
          %1023 = vdwg.mxu0
          %1024 = vst.msk [vmem:[%s286] sm:$0xff] %vm980, %v1019
        $region52: #{multi_head_attention.3} parent=39 // pred_fallthru
          _
        %s1025 = sand.u32 %s174, 1
        %s1026 = scalar_lea.sflag [#allocation6], %s1025
        %s1027 = sand.u32 %s174, 1
        %s1028 = smul.addr %s1027, 8
        %s1029 = scalar_lea.vmem [#allocation5], %s1028
        // Predicated region
        $region53: #{multi_head_attention.3} parent=39 // pred_check
          %p1030 = pneg %p184
        $region54: #{multi_head_attention.3} parent=39 // pred_check_branch
          %1032 = sbr.rel (%p1030) target = $region56
        $region55: #{multi_head_attention.3} parent=39 // pred_region
          %s1034 = ssub.s32 128, 128
          %1035 = vsyncadd %s1026, %s1034
          %s1036 = sadd.s32 %s25, %s24
          %s1037 = smul.addr %s1036, 128
          %s1038 = scalar_lea.hbm %s5, %s1037
          %s1040 = sshll.u32 %s1029, 4
          %s1041 = int_to_ptr.vmem [resolvable:$true] %s1040
          %1043 = dma.vmem_to_hbm [thread:$0]  %s1041, 128, %s1038, %s1026
        $region56: #{multi_head_attention.3} parent=39 // pred_fallthru
          _
      $region40: #{multi_head_attention.3} parent=5 // pred_fallthru
        _
      %p1044 = scmp.le.s32.totalorder 2, %s14
      // Predicated region
      $region57: #{multi_head_attention.3} parent=5 // pred_check
        %p1045 = pneg %p1044
      $region58: #{multi_head_attention.3} parent=5 // pred_check_branch
        %1047 = sbr.rel (%p1045) target = $region60
      $region59: #{multi_head_attention.3} parent=5 // pred_region
        %s1048 = ssub.s32 %s14, 2
        // Predicated region
        $region61: #{multi_head_attention.3} parent=59 // pred_check
          %p1049 = pneg %p190
        $region62: #{multi_head_attention.3} parent=59 // pred_check_branch
          %1051 = sbr.rel (%p1049) target = $region64
        $region63: #{multi_head_attention.3} parent=59 // pred_region
          %s1052 = sand.u32 %s175, 1
          %s1053 = scalar_lea.sflag [#allocation6], %s1052
          %s1054 = sand.u32 %s175, 1
          %s1055 = smul.addr %s1054, 8
          %s1056 = scalar_lea.vmem [#allocation5], %s1055
          %1057 = dma.done %s1053, 128
        $region64: #{multi_head_attention.3} parent=59 // pred_fallthru
          _
      $region60: #{multi_head_attention.3} parent=5 // pred_fallthru
        _
    $region6: #{multi_head_attention.3} parent=1 // loop_footer
      %s18 = sadd.s32 1, %s14
    $region7: #{multi_head_attention.3} parent=1 // loop_footer_branch
      %13 = sbr.rel target = $region3
    $region8: #{multi_head_attention.3} parent=1 // loop_exit
      _
    %1058 = vsyncpa [#allocation6], 1
    %s1059 = scalar_lea.sflag [#allocation6], 1
    %1060 = vsyncpa %s1059, 1

</llo_original>
